<compile_context>
chip_gen: v5e
topology: v5e:2x2
jax: 0.10.0
libtpu: 0.0.40
codegen_flags: <defaults>
</compile_context>

<pallas_src>
import math
import functools

import jax
import jax.numpy as jnp
import numpy as np
from jax import lax
from jax.experimental import pallas as pl
from jax.experimental.pallas import tpu as pltpu


# ----------------------------- kernel helpers ------------------------------

def _layer_norm(x, gamma, beta, eps=1e-5):
    # f32 elementwise math (keeps v5e fast and accuracy high).
    mean = jnp.mean(x, axis=-1, keepdims=True)
    var = jnp.mean(jnp.square(x - mean), axis=-1, keepdims=True)
    return (x - mean) * lax.rsqrt(var + eps) * gamma + beta


def _gelu_tanh(x):
    c = math.sqrt(2.0 / math.pi)
    return 0.5 * x * (1.0 + jnp.tanh(c * (x + 0.044715 * x * x * x)))


# ------------------------------- the kernel --------------------------------

def layer_kernel(x_ref,
                 ln1_g_ref, ln1_b_ref,
                 w_attn_ref, b_attn_ref,
                 w_aproj_ref, b_aproj_ref,
                 ln2_g_ref, ln2_b_ref,
                 w_fc_ref, b_fc_ref,
                 w_mproj_ref, b_mproj_ref,
                 o_ref,
                 *, n_heads, head_dim):
    x = x_ref[0]                                   # (L, D) f32 — one batch row
    L, D = x.shape
    f32 = jnp.float32
    bf16 = jnp.bfloat16

    # ---- attention branch: x + c_proj(softmax(QK^T/sqrt(hd)) V) ----
    h1 = _layer_norm(x, ln1_g_ref[...], ln1_b_ref[...])

    # qkv projection: bf16 MXU inputs, f32 accumulation.
    qkv = jnp.dot(h1.astype(bf16), w_attn_ref[...],
                  preferred_element_type=f32) + b_attn_ref[...]        # (L, 3D)
    q = qkv[:, 0 * D:1 * D].astype(bf16)
    k = qkv[:, 1 * D:2 * D].astype(bf16)
    v = qkv[:, 2 * D:3 * D].astype(bf16)

    # Causal mask as one additive bias (computed once, reused by every head).
    row = lax.broadcasted_iota(jnp.int32, (L, L), 0)
    col = lax.broadcasted_iota(jnp.int32, (L, L), 1)
    mask_bias = jnp.where(row >= col, 0.0, -1e30).astype(f32)          # (L, L)

    scale = 1.0 / math.sqrt(head_dim)
    w_ap = w_aproj_ref[...]                                            # (D, D) bf16

    # Per-head attention with the head-concat folded into the output
    # projection (accumulate o_h @ w_aproj[h*hd:(h+1)*hd, :] into f32 acc).
    acc = jnp.zeros((L, D), f32)
    for h in range(n_heads):                       # static unrolled loop
        sl = slice(h * head_dim, (h + 1) * head_dim)
        qh, kh, vh = q[:, sl], k[:, sl], v[:, sl]
        # Contract over head_dim directly — no explicit kh.T transpose.
        s = lax.dot_general(qh, kh, (((1,), (1,)), ((), ())),
                            preferred_element_type=f32)                # (L, L)
        s = s * scale + mask_bias
        m = jnp.max(s, axis=-1, keepdims=True)
        p = jnp.exp(s - m)                                             # unnormalized
        l = jnp.sum(p, axis=-1, keepdims=True)                         # (L, 1)
        o_h = jnp.dot(p.astype(bf16), vh, preferred_element_type=f32)  # (L, hd)
        # Deferred softmax normalization: EUP reciprocal on the narrow result
        # instead of an (L, L) VPU divide.
        o_h = o_h * pl.reciprocal(l, approx=True)
        acc = acc + jnp.dot(o_h.astype(bf16), w_ap[sl, :],
                            preferred_element_type=f32)
    x1 = x + acc + b_aproj_ref[...]

    # ---- MLP branch: x1 + c_proj(gelu_tanh(c_fc(LN2(x1)))) ----
    h2 = _layer_norm(x1, ln2_g_ref[...], ln2_b_ref[...])
    f = jnp.dot(h2.astype(bf16), w_fc_ref[...],
                preferred_element_type=f32) + b_fc_ref[...]            # (L, 4D)
    f = _gelu_tanh(f)                                                  # f32 VPU/EUP
    mlp_out = jnp.dot(f.astype(bf16), w_mproj_ref[...],
                      preferred_element_type=f32) + b_mproj_ref[...]

    o_ref[0] = (x1 + mlp_out).astype(o_ref.dtype)


# ------------------------------- wrapper ------------------------------------

def transformer_layer(x, params, n_heads):
    B, L, D = x.shape
    head_dim = D // n_heads

    (ln1_g, ln1_b, w_attn, b_attn, w_aproj, b_aproj,
     ln2_g, ln2_b, w_fc, b_fc, w_mproj, b_mproj) = params

    # Matmul weights go to bf16 (halves DMA bytes + VMEM residency, 2-4x MXU
    # rate). LN params and biases stay f32 (added after f32 accumulation).
    w_attn_b = w_attn.astype(jnp.bfloat16)
    w_aproj_b = w_aproj.astype(jnp.bfloat16)
    w_fc_b = w_fc.astype(jnp.bfloat16)
    w_mproj_b = w_mproj.astype(jnp.bfloat16)

    def full(arr):
        # whole-array block, same block index at every grid step
        return pl.BlockSpec(arr.shape, lambda b: (0,) * arr.ndim)

    kernel = functools.partial(layer_kernel, n_heads=n_heads, head_dim=head_dim)

    # ---- VMEM budget from actual buffer sizes (bytes) ----
    w_bytes = 2 * (D * 3 * D + D * D + D * 4 * D + 4 * D * D)      # bf16 weights
    small_bytes = 4 * (2 * D + 2 * D + 3 * D + D + 4 * D + D)      # LN params + biases
    io_bytes = 2 * 2 * (L * D * 4)                                 # x/out, double buffered
    interm_bytes = 4 * (L * 3 * D + 2 * L * 4 * D + 6 * L * D + 3 * L * L)
    vmem_limit = 2 * (w_bytes + small_bytes) + io_bytes + interm_bytes
    vmem_limit = int(min(max(int(vmem_limit * 1.5) + (4 << 20), 16 << 20), 64 << 20))

    # ---- advisory cost estimate for XLA scheduling around the custom call ----
    flops = B * (24 * L * D * D + 4 * L * L * D)
    transcendentals = B * (n_heads * L * L + L * 4 * D + 2 * L + n_heads * L)
    bytes_accessed = 2 * B * L * D * 4 + w_bytes + small_bytes

    return pl.pallas_call(
        kernel,
        out_shape=jax.ShapeDtypeStruct((B, L, D), x.dtype),
        grid_spec=pltpu.PrefetchScalarGridSpec(
            num_scalar_prefetch=0,
            grid=(B,),                               # B parallel steps (2 TCs on v7x)
            in_specs=[
                pl.BlockSpec((1, L, D), lambda b: (b, 0, 0)),   # x: one batch row
                full(ln1_g), full(ln1_b),
                full(w_attn_b), full(b_attn),
                full(w_aproj_b), full(b_aproj),
                full(ln2_g), full(ln2_b),
                full(w_fc_b), full(b_fc),
                full(w_mproj_b), full(b_mproj),
            ],
            out_specs=pl.BlockSpec((1, L, D), lambda b: (b, 0, 0)),
        ),
        compiler_params=pltpu.CompilerParams(
            dimension_semantics=("parallel",),
            vmem_limit_bytes=vmem_limit),
        cost_estimate=pl.CostEstimate(
            flops=flops,
            transcendentals=transcendentals,
            bytes_accessed=bytes_accessed),
    )(x, ln1_g, ln1_b, w_attn_b, b_attn, w_aproj_b, b_aproj,
      ln2_g, ln2_b, w_fc_b, b_fc, w_mproj_b, b_mproj)


# --------------------------- pure-JAX reference -----------------------------

def reference_layer(x, params, n_heads):
    (ln1_g, ln1_b, w_attn, b_attn, w_aproj, b_aproj,
     ln2_g, ln2_b, w_fc, b_fc, w_mproj, b_mproj) = params
    B, L, D = x.shape
    hd = D // n_heads

    h1 = _layer_norm(x, ln1_g[0], ln1_b[0])
    qkv = h1 @ w_attn + b_attn[0]
    q, k, v = jnp.split(qkv, 3, axis=-1)
    q = q.reshape(B, L, n_heads, hd).transpose(0, 2, 1, 3)
    k = k.reshape(B, L, n_heads, hd).transpose(0, 2, 1, 3)
    v = v.reshape(B, L, n_heads, hd).transpose(0, 2, 1, 3)
    s = jnp.einsum('bhld,bhmd->bhlm', q, k) / math.sqrt(hd)
    mask = jnp.tril(jnp.ones((L, L), dtype=bool))
    s = jnp.where(mask[None, None], s, -jnp.inf)
    p = jax.nn.softmax(s, axis=-1)
    o = jnp.einsum('bhlm,bhmd->bhld', p, v).transpose(0, 2, 1, 3).reshape(B, L, D)
    x1 = x + o @ w_aproj + b_aproj[0]
    h2 = _layer_norm(x1, ln2_g[0], ln2_b[0])
    f = _gelu_tanh(h2 @ w_fc + b_fc[0])
    return x1 + f @ w_mproj + b_mproj[0]


# --------------------------------- main -------------------------------------

if __name__ == "__main__":
    # Small but lane/sublane-dense shapes (L multiple of 8, D multiple of 128).
    B, L, D = 2, 16, 128
    n_heads = 4

    key = jax.random.PRNGKey(0)
    ks = jax.random.split(key, 16)

    def nrm(k, shape, scale=0.02):
        return (scale * jax.random.normal(k, shape)).astype(jnp.float32)

    # Deterministic synthetic parameters. Linear weights stored as (in, out)
    # so the kernel computes x @ W + b (same math as PyTorch's x @ W.T + b).
    params = (
        jnp.ones((1, D), jnp.float32),            # ln_1 gamma
        jnp.zeros((1, D), jnp.float32),           # ln_1 beta
        nrm(ks[0], (D, 3 * D)),                   # attn.c_attn weight
        nrm(ks[1], (1, 3 * D)),                   # attn.c_attn bias
        nrm(ks[2], (D, D)),                       # attn.c_proj weight
        nrm(ks[3], (1, D)),                       # attn.c_proj bias
        jnp.ones((1, D), jnp.float32),            # ln_2 gamma
        jnp.zeros((1, D), jnp.float32),           # ln_2 beta
        nrm(ks[4], (D, 4 * D)),                   # mlp.c_fc weight
        nrm(ks[5], (1, 4 * D)),                   # mlp.c_fc bias
        nrm(ks[6], (4 * D, D)),                   # mlp.c_proj weight
        nrm(ks[7], (1, D)),                       # mlp.c_proj bias
    )

    x = jax.random.normal(ks[8], (B, L, D), dtype=jnp.float32)

    out = transformer_layer(x, params, n_heads)
    out = jax.block_until_ready(out)

    ref = reference_layer(x, params, n_heads)
    # bf16 MXU inputs vs f32 reference -> loose-but-meaningful tolerance.
    np.testing.assert_allclose(np.asarray(out), np.asarray(ref),
                               rtol=2e-2, atol=2e-2)

    print("KERNEL_OK")
</pallas_src>

<mosaic_0001>
module attributes {stable_mosaic.version = 11 : i64} {
  func.func @layer_kernel(%arg0: i32, %arg1: memref<1x16x128xf32, #tpu.memory_space<vmem>>, %arg2: memref<1x128xf32, #tpu.memory_space<vmem>>, %arg3: memref<1x128xf32, #tpu.memory_space<vmem>>, %arg4: memref<128x384xbf16, #tpu.memory_space<vmem>>, %arg5: memref<1x384xf32, #tpu.memory_space<vmem>>, %arg6: memref<128x128xbf16, #tpu.memory_space<vmem>>, %arg7: memref<1x128xf32, #tpu.memory_space<vmem>>, %arg8: memref<1x128xf32, #tpu.memory_space<vmem>>, %arg9: memref<1x128xf32, #tpu.memory_space<vmem>>, %arg10: memref<128x512xbf16, #tpu.memory_space<vmem>>, %arg11: memref<1x512xf32, #tpu.memory_space<vmem>>, %arg12: memref<512x128xbf16, #tpu.memory_space<vmem>>, %arg13: memref<1x128xf32, #tpu.memory_space<vmem>>, %arg14: memref<1x16x128xf32, #tpu.memory_space<vmem>>) attributes {dimension_semantics = [#tpu.dimension_semantics<parallel>], iteration_bounds = array<i64: 2>, scalar_prefetch = 0 : i64, scratch_operands = 0 : i64, tpu.core_type = #tpu.core_type<tc>, window_params = [{transform_indices = @transform_0, window_bounds = array<i64: 1, 16, 128>}, {pipeline_mode = #tpu.pipeline_mode<synchronous>, transform_indices = @transform_1, window_bounds = array<i64: 1, 128>}, {pipeline_mode = #tpu.pipeline_mode<synchronous>, transform_indices = @transform_2, window_bounds = array<i64: 1, 128>}, {pipeline_mode = #tpu.pipeline_mode<synchronous>, transform_indices = @transform_3, window_bounds = array<i64: 128, 384>}, {pipeline_mode = #tpu.pipeline_mode<synchronous>, transform_indices = @transform_4, window_bounds = array<i64: 1, 384>}, {pipeline_mode = #tpu.pipeline_mode<synchronous>, transform_indices = @transform_5, window_bounds = array<i64: 128, 128>}, {pipeline_mode = #tpu.pipeline_mode<synchronous>, transform_indices = @transform_6, window_bounds = array<i64: 1, 128>}, {pipeline_mode = #tpu.pipeline_mode<synchronous>, transform_indices = @transform_7, window_bounds = array<i64: 1, 128>}, {pipeline_mode = #tpu.pipeline_mode<synchronous>, transform_indices = @transform_8, window_bounds = array<i64: 1, 128>}, {pipeline_mode = #tpu.pipeline_mode<synchronous>, transform_indices = @transform_9, window_bounds = array<i64: 128, 512>}, {pipeline_mode = #tpu.pipeline_mode<synchronous>, transform_indices = @transform_10, window_bounds = array<i64: 1, 512>}, {pipeline_mode = #tpu.pipeline_mode<synchronous>, transform_indices = @transform_11, window_bounds = array<i64: 512, 128>}, {pipeline_mode = #tpu.pipeline_mode<synchronous>, transform_indices = @transform_12, window_bounds = array<i64: 1, 128>}, {transform_indices = @transform_13, window_bounds = array<i64: 1, 16, 128>}]} {
    %c0 = arith.constant 0 : index
    %c0_0 = arith.constant 0 : index
    %c0_1 = arith.constant 0 : index
    %0 = vector.load %arg1[%c0, %c0_0, %c0_1] : memref<1x16x128xf32, #tpu.memory_space<vmem>>, vector<1x16x128xf32>
    %1 = vector.shape_cast %0 : vector<1x16x128xf32> to vector<16x128xf32>
    %c0_2 = arith.constant 0 : index
    %c0_3 = arith.constant 0 : index
    %2 = vector.load %arg2[%c0_2, %c0_3] : memref<1x128xf32, #tpu.memory_space<vmem>>, vector<1x128xf32>
    %c0_4 = arith.constant 0 : index
    %c0_5 = arith.constant 0 : index
    %3 = vector.load %arg3[%c0_4, %c0_5] : memref<1x128xf32, #tpu.memory_space<vmem>>, vector<1x128xf32>
    %cst = arith.constant dense<0.000000e+00> : vector<16xf32>
    %4 = vector.multi_reduction <add>, %1, %cst [1] : vector<16x128xf32> to vector<16xf32>
    %5 = vector.shape_cast %4 : vector<16xf32> to vector<16x1xf32>
    %cst_6 = arith.constant 1.280000e+02 : f32
    %6 = vector.broadcast %cst_6 : f32 to vector<16x1xf32>
    %7 = arith.divf %5, %6 : vector<16x1xf32>
    %8 = vector.broadcast %7 : vector<16x1xf32> to vector<16x128xf32>
    %9 = arith.subf %1, %8 : vector<16x128xf32>
    %10 = arith.mulf %9, %9 : vector<16x128xf32>
    %cst_7 = arith.constant dense<0.000000e+00> : vector<16xf32>
    %11 = vector.multi_reduction <add>, %10, %cst_7 [1] : vector<16x128xf32> to vector<16xf32>
    %12 = vector.shape_cast %11 : vector<16xf32> to vector<16x1xf32>
    %cst_8 = arith.constant 1.280000e+02 : f32
    %13 = vector.broadcast %cst_8 : f32 to vector<16x1xf32>
    %14 = arith.divf %12, %13 : vector<16x1xf32>
    %15 = vector.broadcast %7 : vector<16x1xf32> to vector<16x128xf32>
    %16 = arith.subf %1, %15 : vector<16x128xf32>
    %cst_9 = arith.constant 9.99999974E-6 : f32
    %17 = vector.broadcast %cst_9 : f32 to vector<16x1xf32>
    %18 = arith.addf %14, %17 : vector<16x1xf32>
    %19 = math.rsqrt %18 : vector<16x1xf32>
    %20 = vector.broadcast %19 : vector<16x1xf32> to vector<16x128xf32>
    %21 = arith.mulf %16, %20 : vector<16x128xf32>
    %22 = vector.broadcast %2 : vector<1x128xf32> to vector<16x128xf32>
    %23 = arith.mulf %21, %22 : vector<16x128xf32>
    %24 = vector.broadcast %3 : vector<1x128xf32> to vector<16x128xf32>
    %25 = arith.addf %23, %24 : vector<16x128xf32>
    %26 = arith.truncf %25 : vector<16x128xf32> to vector<16x128xbf16>
    %c0_10 = arith.constant 0 : index
    %c0_11 = arith.constant 0 : index
    %27 = vector.load %arg4[%c0_10, %c0_11] : memref<128x384xbf16, #tpu.memory_space<vmem>>, vector<128x384xbf16>
    %cst_12 = arith.constant dense<0.000000e+00> : vector<16x384xf32>
    %28 = tpu.matmul %26, %27, %cst_12 {dimension_numbers = #tpu.dot_dimension_numbers<[1], [0], [0], [1], [0, 0, 1, 1], [], []>} : vector<16x128xbf16>, vector<128x384xbf16>, vector<16x384xf32> -> vector<16x384xf32>
    %c0_13 = arith.constant 0 : index
    %c0_14 = arith.constant 0 : index
    %29 = vector.load %arg5[%c0_13, %c0_14] : memref<1x384xf32, #tpu.memory_space<vmem>>, vector<1x384xf32>
    %30 = vector.broadcast %29 : vector<1x384xf32> to vector<16x384xf32>
    %31 = arith.addf %28, %30 : vector<16x384xf32>
    %32 = vector.extract_strided_slice %31 {offsets = [0, 0], sizes = [16, 128], strides = [1, 1]} : vector<16x384xf32> to vector<16x128xf32>
    %33 = arith.truncf %32 : vector<16x128xf32> to vector<16x128xbf16>
    %34 = vector.extract_strided_slice %31 {offsets = [0, 128], sizes = [16, 128], strides = [1, 1]} : vector<16x384xf32> to vector<16x128xf32>
    %35 = arith.truncf %34 : vector<16x128xf32> to vector<16x128xbf16>
    %36 = vector.extract_strided_slice %31 {offsets = [0, 256], sizes = [16, 128], strides = [1, 1]} : vector<16x384xf32> to vector<16x128xf32>
    %37 = arith.truncf %36 : vector<16x128xf32> to vector<16x128xbf16>
    %38 = tpu.iota {dimensions = array<i32: 0>} : vector<16x16xi32>
    %39 = tpu.iota {dimensions = array<i32: 1>} : vector<16x16xi32>
    %40 = arith.cmpi sge, %38, %39 : vector<16x16xi32>
    %cst_15 = arith.constant 0.000000e+00 : f32
    %cst_16 = arith.constant -1.000000e+30 : f32
    %41 = vector.broadcast %cst_15 : f32 to vector<16x16xf32>
    %42 = vector.broadcast %cst_16 : f32 to vector<16x16xf32>
    %43 = arith.select %40, %41, %42 : vector<16x16xi1>, vector<16x16xf32>
    %c0_17 = arith.constant 0 : index
    %c0_18 = arith.constant 0 : index
    %44 = vector.load %arg6[%c0_17, %c0_18] : memref<128x128xbf16, #tpu.memory_space<vmem>>, vector<128x128xbf16>
    %cst_19 = arith.constant 0.000000e+00 : f32
    %45 = vector.broadcast %cst_19 : f32 to vector<16x128xf32>
    %46 = vector.extract_strided_slice %33 {offsets = [0, 0], sizes = [16, 32], strides = [1, 1]} : vector<16x128xbf16> to vector<16x32xbf16>
    %47 = vector.extract_strided_slice %35 {offsets = [0, 0], sizes = [16, 32], strides = [1, 1]} : vector<16x128xbf16> to vector<16x32xbf16>
    %48 = vector.extract_strided_slice %37 {offsets = [0, 0], sizes = [16, 32], strides = [1, 1]} : vector<16x128xbf16> to vector<16x32xbf16>
    %cst_20 = arith.constant dense<0.000000e+00> : vector<16x16xf32>
    %49 = tpu.matmul %46, %47, %cst_20 {dimension_numbers = #tpu.dot_dimension_numbers<[1], [1], [0], [0], [0, 0, 1, 0], [], []>} : vector<16x32xbf16>, vector<16x32xbf16>, vector<16x16xf32> -> vector<16x16xf32>
    %cst_21 = arith.constant 0.176776692 : f32
    %50 = vector.broadcast %cst_21 : f32 to vector<16x16xf32>
    %51 = arith.mulf %49, %50 : vector<16x16xf32>
    %52 = arith.addf %51, %43 : vector<16x16xf32>
    %cst_22 = arith.constant dense<0xFF800000> : vector<16xf32>
    %53 = vector.multi_reduction <maximumf>, %52, %cst_22 [1] : vector<16x16xf32> to vector<16xf32>
    %54 = vector.shape_cast %53 : vector<16xf32> to vector<16x1xf32>
    %55 = vector.broadcast %54 : vector<16x1xf32> to vector<16x16xf32>
    %56 = arith.subf %52, %55 : vector<16x16xf32>
    %57 = math.exp %56 : vector<16x16xf32>
    %cst_23 = arith.constant dense<0.000000e+00> : vector<16xf32>
    %58 = vector.multi_reduction <add>, %57, %cst_23 [1] : vector<16x16xf32> to vector<16xf32>
    %59 = vector.shape_cast %58 : vector<16xf32> to vector<16x1xf32>
    %60 = arith.truncf %57 : vector<16x16xf32> to vector<16x16xbf16>
    %cst_24 = arith.constant dense<0.000000e+00> : vector<16x32xf32>
    %61 = tpu.matmul %60, %48, %cst_24 {dimension_numbers = #tpu.dot_dimension_numbers<[1], [0], [0], [1], [0, 0, 1, 1], [], []>} : vector<16x16xbf16>, vector<16x32xbf16>, vector<16x32xf32> -> vector<16x32xf32>
    %62 = tpu.reciprocal %59 {approx = true} : vector<16x1xf32> -> vector<16x1xf32>
    %63 = vector.broadcast %62 : vector<16x1xf32> to vector<16x32xf32>
    %64 = arith.mulf %61, %63 : vector<16x32xf32>
    %65 = arith.truncf %64 : vector<16x32xf32> to vector<16x32xbf16>
    %66 = vector.extract_strided_slice %44 {offsets = [0, 0], sizes = [32, 128], strides = [1, 1]} : vector<128x128xbf16> to vector<32x128xbf16>
    %cst_25 = arith.constant dense<0.000000e+00> : vector<16x128xf32>
    %67 = tpu.matmul %65, %66, %cst_25 {dimension_numbers = #tpu.dot_dimension_numbers<[1], [0], [0], [1], [0, 0, 1, 1], [], []>} : vector<16x32xbf16>, vector<32x128xbf16>, vector<16x128xf32> -> vector<16x128xf32>
    %68 = arith.addf %45, %67 : vector<16x128xf32>
    %69 = vector.extract_strided_slice %33 {offsets = [0, 32], sizes = [16, 32], strides = [1, 1]} : vector<16x128xbf16> to vector<16x32xbf16>
    %70 = vector.extract_strided_slice %35 {offsets = [0, 32], sizes = [16, 32], strides = [1, 1]} : vector<16x128xbf16> to vector<16x32xbf16>
    %71 = vector.extract_strided_slice %37 {offsets = [0, 32], sizes = [16, 32], strides = [1, 1]} : vector<16x128xbf16> to vector<16x32xbf16>
    %cst_26 = arith.constant dense<0.000000e+00> : vector<16x16xf32>
    %72 = tpu.matmul %69, %70, %cst_26 {dimension_numbers = #tpu.dot_dimension_numbers<[1], [1], [0], [0], [0, 0, 1, 0], [], []>} : vector<16x32xbf16>, vector<16x32xbf16>, vector<16x16xf32> -> vector<16x16xf32>
    %cst_27 = arith.constant 0.176776692 : f32
    %73 = vector.broadcast %cst_27 : f32 to vector<16x16xf32>
    %74 = arith.mulf %72, %73 : vector<16x16xf32>
    %75 = arith.addf %74, %43 : vector<16x16xf32>
    %cst_28 = arith.constant dense<0xFF800000> : vector<16xf32>
    %76 = vector.multi_reduction <maximumf>, %75, %cst_28 [1] : vector<16x16xf32> to vector<16xf32>
    %77 = vector.shape_cast %76 : vector<16xf32> to vector<16x1xf32>
    %78 = vector.broadcast %77 : vector<16x1xf32> to vector<16x16xf32>
    %79 = arith.subf %75, %78 : vector<16x16xf32>
    %80 = math.exp %79 : vector<16x16xf32>
    %cst_29 = arith.constant dense<0.000000e+00> : vector<16xf32>
    %81 = vector.multi_reduction <add>, %80, %cst_29 [1] : vector<16x16xf32> to vector<16xf32>
    %82 = vector.shape_cast %81 : vector<16xf32> to vector<16x1xf32>
    %83 = arith.truncf %80 : vector<16x16xf32> to vector<16x16xbf16>
    %cst_30 = arith.constant dense<0.000000e+00> : vector<16x32xf32>
    %84 = tpu.matmul %83, %71, %cst_30 {dimension_numbers = #tpu.dot_dimension_numbers<[1], [0], [0], [1], [0, 0, 1, 1], [], []>} : vector<16x16xbf16>, vector<16x32xbf16>, vector<16x32xf32> -> vector<16x32xf32>
    %85 = tpu.reciprocal %82 {approx = true} : vector<16x1xf32> -> vector<16x1xf32>
    %86 = vector.broadcast %85 : vector<16x1xf32> to vector<16x32xf32>
    %87 = arith.mulf %84, %86 : vector<16x32xf32>
    %88 = arith.truncf %87 : vector<16x32xf32> to vector<16x32xbf16>
    %89 = vector.extract_strided_slice %44 {offsets = [32, 0], sizes = [32, 128], strides = [1, 1]} : vector<128x128xbf16> to vector<32x128xbf16>
    %cst_31 = arith.constant dense<0.000000e+00> : vector<16x128xf32>
    %90 = tpu.matmul %88, %89, %cst_31 {dimension_numbers = #tpu.dot_dimension_numbers<[1], [0], [0], [1], [0, 0, 1, 1], [], []>} : vector<16x32xbf16>, vector<32x128xbf16>, vector<16x128xf32> -> vector<16x128xf32>
    %91 = arith.addf %68, %90 : vector<16x128xf32>
    %92 = vector.extract_strided_slice %33 {offsets = [0, 64], sizes = [16, 32], strides = [1, 1]} : vector<16x128xbf16> to vector<16x32xbf16>
    %93 = vector.extract_strided_slice %35 {offsets = [0, 64], sizes = [16, 32], strides = [1, 1]} : vector<16x128xbf16> to vector<16x32xbf16>
    %94 = vector.extract_strided_slice %37 {offsets = [0, 64], sizes = [16, 32], strides = [1, 1]} : vector<16x128xbf16> to vector<16x32xbf16>
    %cst_32 = arith.constant dense<0.000000e+00> : vector<16x16xf32>
    %95 = tpu.matmul %92, %93, %cst_32 {dimension_numbers = #tpu.dot_dimension_numbers<[1], [1], [0], [0], [0, 0, 1, 0], [], []>} : vector<16x32xbf16>, vector<16x32xbf16>, vector<16x16xf32> -> vector<16x16xf32>
    %cst_33 = arith.constant 0.176776692 : f32
    %96 = vector.broadcast %cst_33 : f32 to vector<16x16xf32>
    %97 = arith.mulf %95, %96 : vector<16x16xf32>
    %98 = arith.addf %97, %43 : vector<16x16xf32>
    %cst_34 = arith.constant dense<0xFF800000> : vector<16xf32>
    %99 = vector.multi_reduction <maximumf>, %98, %cst_34 [1] : vector<16x16xf32> to vector<16xf32>
    %100 = vector.shape_cast %99 : vector<16xf32> to vector<16x1xf32>
    %101 = vector.broadcast %100 : vector<16x1xf32> to vector<16x16xf32>
    %102 = arith.subf %98, %101 : vector<16x16xf32>
    %103 = math.exp %102 : vector<16x16xf32>
    %cst_35 = arith.constant dense<0.000000e+00> : vector<16xf32>
    %104 = vector.multi_reduction <add>, %103, %cst_35 [1] : vector<16x16xf32> to vector<16xf32>
    %105 = vector.shape_cast %104 : vector<16xf32> to vector<16x1xf32>
    %106 = arith.truncf %103 : vector<16x16xf32> to vector<16x16xbf16>
    %cst_36 = arith.constant dense<0.000000e+00> : vector<16x32xf32>
    %107 = tpu.matmul %106, %94, %cst_36 {dimension_numbers = #tpu.dot_dimension_numbers<[1], [0], [0], [1], [0, 0, 1, 1], [], []>} : vector<16x16xbf16>, vector<16x32xbf16>, vector<16x32xf32> -> vector<16x32xf32>
    %108 = tpu.reciprocal %105 {approx = true} : vector<16x1xf32> -> vector<16x1xf32>
    %109 = vector.broadcast %108 : vector<16x1xf32> to vector<16x32xf32>
    %110 = arith.mulf %107, %109 : vector<16x32xf32>
    %111 = arith.truncf %110 : vector<16x32xf32> to vector<16x32xbf16>
    %112 = vector.extract_strided_slice %44 {offsets = [64, 0], sizes = [32, 128], strides = [1, 1]} : vector<128x128xbf16> to vector<32x128xbf16>
    %cst_37 = arith.constant dense<0.000000e+00> : vector<16x128xf32>
    %113 = tpu.matmul %111, %112, %cst_37 {dimension_numbers = #tpu.dot_dimension_numbers<[1], [0], [0], [1], [0, 0, 1, 1], [], []>} : vector<16x32xbf16>, vector<32x128xbf16>, vector<16x128xf32> -> vector<16x128xf32>
    %114 = arith.addf %91, %113 : vector<16x128xf32>
    %115 = vector.extract_strided_slice %33 {offsets = [0, 96], sizes = [16, 32], strides = [1, 1]} : vector<16x128xbf16> to vector<16x32xbf16>
    %116 = vector.extract_strided_slice %35 {offsets = [0, 96], sizes = [16, 32], strides = [1, 1]} : vector<16x128xbf16> to vector<16x32xbf16>
    %117 = vector.extract_strided_slice %37 {offsets = [0, 96], sizes = [16, 32], strides = [1, 1]} : vector<16x128xbf16> to vector<16x32xbf16>
    %cst_38 = arith.constant dense<0.000000e+00> : vector<16x16xf32>
    %118 = tpu.matmul %115, %116, %cst_38 {dimension_numbers = #tpu.dot_dimension_numbers<[1], [1], [0], [0], [0, 0, 1, 0], [], []>} : vector<16x32xbf16>, vector<16x32xbf16>, vector<16x16xf32> -> vector<16x16xf32>
    %cst_39 = arith.constant 0.176776692 : f32
    %119 = vector.broadcast %cst_39 : f32 to vector<16x16xf32>
    %120 = arith.mulf %118, %119 : vector<16x16xf32>
    %121 = arith.addf %120, %43 : vector<16x16xf32>
    %cst_40 = arith.constant dense<0xFF800000> : vector<16xf32>
    %122 = vector.multi_reduction <maximumf>, %121, %cst_40 [1] : vector<16x16xf32> to vector<16xf32>
    %123 = vector.shape_cast %122 : vector<16xf32> to vector<16x1xf32>
    %124 = vector.broadcast %123 : vector<16x1xf32> to vector<16x16xf32>
    %125 = arith.subf %121, %124 : vector<16x16xf32>
    %126 = math.exp %125 : vector<16x16xf32>
    %cst_41 = arith.constant dense<0.000000e+00> : vector<16xf32>
    %127 = vector.multi_reduction <add>, %126, %cst_41 [1] : vector<16x16xf32> to vector<16xf32>
    %128 = vector.shape_cast %127 : vector<16xf32> to vector<16x1xf32>
    %129 = arith.truncf %126 : vector<16x16xf32> to vector<16x16xbf16>
    %cst_42 = arith.constant dense<0.000000e+00> : vector<16x32xf32>
    %130 = tpu.matmul %129, %117, %cst_42 {dimension_numbers = #tpu.dot_dimension_numbers<[1], [0], [0], [1], [0, 0, 1, 1], [], []>} : vector<16x16xbf16>, vector<16x32xbf16>, vector<16x32xf32> -> vector<16x32xf32>
    %131 = tpu.reciprocal %128 {approx = true} : vector<16x1xf32> -> vector<16x1xf32>
    %132 = vector.broadcast %131 : vector<16x1xf32> to vector<16x32xf32>
    %133 = arith.mulf %130, %132 : vector<16x32xf32>
    %134 = arith.truncf %133 : vector<16x32xf32> to vector<16x32xbf16>
    %135 = vector.extract_strided_slice %44 {offsets = [96, 0], sizes = [32, 128], strides = [1, 1]} : vector<128x128xbf16> to vector<32x128xbf16>
    %cst_43 = arith.constant dense<0.000000e+00> : vector<16x128xf32>
    %136 = tpu.matmul %134, %135, %cst_43 {dimension_numbers = #tpu.dot_dimension_numbers<[1], [0], [0], [1], [0, 0, 1, 1], [], []>} : vector<16x32xbf16>, vector<32x128xbf16>, vector<16x128xf32> -> vector<16x128xf32>
    %137 = arith.addf %114, %136 : vector<16x128xf32>
    %138 = arith.addf %1, %137 : vector<16x128xf32>
    %c0_44 = arith.constant 0 : index
    %c0_45 = arith.constant 0 : index
    %139 = vector.load %arg7[%c0_44, %c0_45] : memref<1x128xf32, #tpu.memory_space<vmem>>, vector<1x128xf32>
    %140 = vector.broadcast %139 : vector<1x128xf32> to vector<16x128xf32>
    %141 = arith.addf %138, %140 : vector<16x128xf32>
    %c0_46 = arith.constant 0 : index
    %c0_47 = arith.constant 0 : index
    %142 = vector.load %arg8[%c0_46, %c0_47] : memref<1x128xf32, #tpu.memory_space<vmem>>, vector<1x128xf32>
    %c0_48 = arith.constant 0 : index
    %c0_49 = arith.constant 0 : index
    %143 = vector.load %arg9[%c0_48, %c0_49] : memref<1x128xf32, #tpu.memory_space<vmem>>, vector<1x128xf32>
    %cst_50 = arith.constant dense<0.000000e+00> : vector<16xf32>
    %144 = vector.multi_reduction <add>, %141, %cst_50 [1] : vector<16x128xf32> to vector<16xf32>
    %145 = vector.shape_cast %144 : vector<16xf32> to vector<16x1xf32>
    %cst_51 = arith.constant 1.280000e+02 : f32
    %146 = vector.broadcast %cst_51 : f32 to vector<16x1xf32>
    %147 = arith.divf %145, %146 : vector<16x1xf32>
    %148 = vector.broadcast %147 : vector<16x1xf32> to vector<16x128xf32>
    %149 = arith.subf %141, %148 : vector<16x128xf32>
    %150 = arith.mulf %149, %149 : vector<16x128xf32>
    %cst_52 = arith.constant dense<0.000000e+00> : vector<16xf32>
    %151 = vector.multi_reduction <add>, %150, %cst_52 [1] : vector<16x128xf32> to vector<16xf32>
    %152 = vector.shape_cast %151 : vector<16xf32> to vector<16x1xf32>
    %cst_53 = arith.constant 1.280000e+02 : f32
    %153 = vector.broadcast %cst_53 : f32 to vector<16x1xf32>
    %154 = arith.divf %152, %153 : vector<16x1xf32>
    %155 = vector.broadcast %147 : vector<16x1xf32> to vector<16x128xf32>
    %156 = arith.subf %141, %155 : vector<16x128xf32>
    %cst_54 = arith.constant 9.99999974E-6 : f32
    %157 = vector.broadcast %cst_54 : f32 to vector<16x1xf32>
    %158 = arith.addf %154, %157 : vector<16x1xf32>
    %159 = math.rsqrt %158 : vector<16x1xf32>
    %160 = vector.broadcast %159 : vector<16x1xf32> to vector<16x128xf32>
    %161 = arith.mulf %156, %160 : vector<16x128xf32>
    %162 = vector.broadcast %142 : vector<1x128xf32> to vector<16x128xf32>
    %163 = arith.mulf %161, %162 : vector<16x128xf32>
    %164 = vector.broadcast %143 : vector<1x128xf32> to vector<16x128xf32>
    %165 = arith.addf %163, %164 : vector<16x128xf32>
    %166 = arith.truncf %165 : vector<16x128xf32> to vector<16x128xbf16>
    %c0_55 = arith.constant 0 : index
    %c0_56 = arith.constant 0 : index
    %167 = vector.load %arg10[%c0_55, %c0_56] : memref<128x512xbf16, #tpu.memory_space<vmem>>, vector<128x512xbf16>
    %cst_57 = arith.constant dense<0.000000e+00> : vector<16x512xf32>
    %168 = tpu.matmul %166, %167, %cst_57 {dimension_numbers = #tpu.dot_dimension_numbers<[1], [0], [0], [1], [0, 0, 1, 1], [], []>} : vector<16x128xbf16>, vector<128x512xbf16>, vector<16x512xf32> -> vector<16x512xf32>
    %c0_58 = arith.constant 0 : index
    %c0_59 = arith.constant 0 : index
    %169 = vector.load %arg11[%c0_58, %c0_59] : memref<1x512xf32, #tpu.memory_space<vmem>>, vector<1x512xf32>
    %170 = vector.broadcast %169 : vector<1x512xf32> to vector<16x512xf32>
    %171 = arith.addf %168, %170 : vector<16x512xf32>
    %cst_60 = arith.constant 5.000000e-01 : f32
    %172 = vector.broadcast %cst_60 : f32 to vector<16x512xf32>
    %173 = arith.mulf %172, %171 : vector<16x512xf32>
    %cst_61 = arith.constant 4.471500e-02 : f32
    %174 = vector.broadcast %cst_61 : f32 to vector<16x512xf32>
    %175 = arith.mulf %174, %171 : vector<16x512xf32>
    %176 = arith.mulf %175, %171 : vector<16x512xf32>
    %177 = arith.mulf %176, %171 : vector<16x512xf32>
    %178 = arith.addf %171, %177 : vector<16x512xf32>
    %cst_62 = arith.constant 0.797884583 : f32
    %179 = vector.broadcast %cst_62 : f32 to vector<16x512xf32>
    %180 = arith.mulf %179, %178 : vector<16x512xf32>
    %181 = math.tanh %180 : vector<16x512xf32>
    %cst_63 = arith.constant 1.000000e+00 : f32
    %182 = vector.broadcast %cst_63 : f32 to vector<16x512xf32>
    %183 = arith.addf %182, %181 : vector<16x512xf32>
    %184 = arith.mulf %173, %183 : vector<16x512xf32>
    %185 = arith.truncf %184 : vector<16x512xf32> to vector<16x512xbf16>
    %c0_64 = arith.constant 0 : index
    %c0_65 = arith.constant 0 : index
    %186 = vector.load %arg12[%c0_64, %c0_65] : memref<512x128xbf16, #tpu.memory_space<vmem>>, vector<512x128xbf16>
    %cst_66 = arith.constant dense<0.000000e+00> : vector<16x128xf32>
    %187 = tpu.matmul %185, %186, %cst_66 {dimension_numbers = #tpu.dot_dimension_numbers<[1], [0], [0], [1], [0, 0, 1, 1], [], []>} : vector<16x512xbf16>, vector<512x128xbf16>, vector<16x128xf32> -> vector<16x128xf32>
    %c0_67 = arith.constant 0 : index
    %c0_68 = arith.constant 0 : index
    %188 = vector.load %arg13[%c0_67, %c0_68] : memref<1x128xf32, #tpu.memory_space<vmem>>, vector<1x128xf32>
    %189 = vector.broadcast %188 : vector<1x128xf32> to vector<16x128xf32>
    %190 = arith.addf %187, %189 : vector<16x128xf32>
    %191 = arith.addf %141, %190 : vector<16x128xf32>
    %c0_69 = arith.constant 0 : index
    %c0_70 = arith.constant 0 : index
    %c0_71 = arith.constant 0 : index
    %192 = vector.load %arg14[%c0_69, %c0_70, %c0_71] : memref<1x16x128xf32, #tpu.memory_space<vmem>>, vector<1x16x128xf32>
    %193 = vector.shape_cast %192 : vector<1x16x128xf32> to vector<16x128xf32>
    %194 = vector.shape_cast %191 : vector<16x128xf32> to vector<1x16x128xf32>
    tpu.vector_store %arg14[%c0_69, %c0_70, %c0_71], %194 {strides = array<i32>} : memref<1x16x128xf32, #tpu.memory_space<vmem>>, vector<1x16x128xf32>,
    return
  }
  func.func @transform_0(%arg0: i32) -> (i32, i32, i32) {
    %c0_i32 = arith.constant 0 : i32
    %c0_i32_0 = arith.constant 0 : i32
    %c0_i32_1 = arith.constant 0 : i32
    return %arg0, %c0_i32, %c0_i32_0 : i32, i32, i32
  }
  func.func @transform_1(%arg0: i32) -> (i32, i32) {
    %c0_i32 = arith.constant 0 : i32
    %c0_i32_0 = arith.constant 0 : i32
    %c0_i32_1 = arith.constant 0 : i32
    return %c0_i32, %c0_i32_0 : i32, i32
  }
  func.func @transform_2(%arg0: i32) -> (i32, i32) {
    %c0_i32 = arith.constant 0 : i32
    %c0_i32_0 = arith.constant 0 : i32
    %c0_i32_1 = arith.constant 0 : i32
    return %c0_i32, %c0_i32_0 : i32, i32
  }
  func.func @transform_3(%arg0: i32) -> (i32, i32) {
    %c0_i32 = arith.constant 0 : i32
    %c0_i32_0 = arith.constant 0 : i32
    %c0_i32_1 = arith.constant 0 : i32
    return %c0_i32, %c0_i32_0 : i32, i32
  }
  func.func @transform_4(%arg0: i32) -> (i32, i32) {
    %c0_i32 = arith.constant 0 : i32
    %c0_i32_0 = arith.constant 0 : i32
    %c0_i32_1 = arith.constant 0 : i32
    return %c0_i32, %c0_i32_0 : i32, i32
  }
  func.func @transform_5(%arg0: i32) -> (i32, i32) {
    %c0_i32 = arith.constant 0 : i32
    %c0_i32_0 = arith.constant 0 : i32
    %c0_i32_1 = arith.constant 0 : i32
    return %c0_i32, %c0_i32_0 : i32, i32
  }
  func.func @transform_6(%arg0: i32) -> (i32, i32) {
    %c0_i32 = arith.constant 0 : i32
    %c0_i32_0 = arith.constant 0 : i32
    %c0_i32_1 = arith.constant 0 : i32
    return %c0_i32, %c0_i32_0 : i32, i32
  }
  func.func @transform_7(%arg0: i32) -> (i32, i32) {
    %c0_i32 = arith.constant 0 : i32
    %c0_i32_0 = arith.constant 0 : i32
    %c0_i32_1 = arith.constant 0 : i32
    return %c0_i32, %c0_i32_0 : i32, i32
  }
  func.func @transform_8(%arg0: i32) -> (i32, i32) {
    %c0_i32 = arith.constant 0 : i32
    %c0_i32_0 = arith.constant 0 : i32
    %c0_i32_1 = arith.constant 0 : i32
    return %c0_i32, %c0_i32_0 : i32, i32
  }
  func.func @transform_9(%arg0: i32) -> (i32, i32) {
    %c0_i32 = arith.constant 0 : i32
    %c0_i32_0 = arith.constant 0 : i32
    %c0_i32_1 = arith.constant 0 : i32
    return %c0_i32, %c0_i32_0 : i32, i32
  }
  func.func @transform_10(%arg0: i32) -> (i32, i32) {
    %c0_i32 = arith.constant 0 : i32
    %c0_i32_0 = arith.constant 0 : i32
    %c0_i32_1 = arith.constant 0 : i32
    return %c0_i32, %c0_i32_0 : i32, i32
  }
  func.func @transform_11(%arg0: i32) -> (i32, i32) {
    %c0_i32 = arith.constant 0 : i32
    %c0_i32_0 = arith.constant 0 : i32
    %c0_i32_1 = arith.constant 0 : i32
    return %c0_i32, %c0_i32_0 : i32, i32
  }
  func.func @transform_12(%arg0: i32) -> (i32, i32) {
    %c0_i32 = arith.constant 0 : i32
    %c0_i32_0 = arith.constant 0 : i32
    %c0_i32_1 = arith.constant 0 : i32
    return %c0_i32, %c0_i32_0 : i32, i32
  }
  func.func @transform_13(%arg0: i32) -> (i32, i32, i32) {
    %c0_i32 = arith.constant 0 : i32
    %c0_i32_0 = arith.constant 0 : i32
    %c0_i32_1 = arith.constant 0 : i32
    return %arg0, %c0_i32, %c0_i32_0 : i32, i32, i32
  }
}

</mosaic_0001>

<llo_original>
// kernel: tpu_custom_call.1
$region0: #{tpu_custom_call.1}
  #allocation0 [shape = 'u32[]', space=smem, size = 0x4, offset = 0x4, fixed_abs, tag = 'smem constant byte address 0x4 - core index']
  #allocation1 [shape = 'u32[72,128]{1,0:T(1,128)}', space=vmem, size = 0x9000, scoped, tag = 'internal scratch']
  %s0 = inlined_call_operand.hbm [shape: f32[2,16,128], index: 0, kind: input, shape index: {}]
  %s1 = inlined_call_operand.hbm [shape: f32[1,128], index: 1, kind: input, shape index: {}]
  %s2 = inlined_call_operand.hbm [shape: f32[1,128], index: 2, kind: input, shape index: {}]
  %s3 = inlined_call_operand.hbm [shape: bf16[128,384], index: 3, kind: input, shape index: {}]
  %s4 = inlined_call_operand.vmem [shape: f32[1,384], index: 4, kind: input, shape index: {}]
  %s5 = inlined_call_operand.hbm [shape: bf16[128,128], index: 5, kind: input, shape index: {}]
  %s6 = inlined_call_operand.hbm [shape: f32[1,128], index: 6, kind: input, shape index: {}]
  %s7 = inlined_call_operand.hbm [shape: f32[1,128], index: 7, kind: input, shape index: {}]
  %s8 = inlined_call_operand.hbm [shape: f32[1,128], index: 8, kind: input, shape index: {}]
  %s9 = inlined_call_operand.hbm [shape: bf16[128,512], index: 9, kind: input, shape index: {}]
  %s10 = inlined_call_operand.vmem [shape: f32[1,512], index: 10, kind: input, shape index: {}]
  %s11 = inlined_call_operand.hbm [shape: bf16[512,128], index: 11, kind: input, shape index: {}]
  %s12 = inlined_call_operand.vmem [shape: f32[1,128], index: 12, kind: input, shape index: {}]
  %s13 = inlined_call_operand.hbm [shape: f32[2,16,128], index: 13, kind: output, shape index: {}]
  %s14 = sld [smem:[#allocation0]]
  $region125: #{tpu_custom_call.1} parent=0
    _
  %s16 = ssub.s32 1, %s14
  %s17 = scalar_select 0, %s16, %s14
  $region1: #{tpu_custom_call.1} parent=0
    #allocation2 [shape = 'u8[16384]{0}', space=vmem, size = 0x4000, scoped, tag = 'input window, operand 0']
    #allocation3 [shape = 's32[2]{0}', space=sflag, size = 0x8, scoped, tag = 'scoped memory for tpu_custom_call.1']
    #allocation4 [shape = 's32[2]{0}', space=sflag, size = 0x8, scoped, tag = 'scoped memory for tpu_custom_call.1']
    #allocation5 [shape = 'u8[512]{0}', space=vmem, size = 0x400, scoped, tag = 'input window, operand 1, single buffered']
    #allocation6 [shape = 's32[1]{0}', space=sflag, size = 0x4, scoped, tag = 'scoped memory for tpu_custom_call.1']
    #allocation7 [shape = 'u8[512]{0}', space=vmem, size = 0x400, scoped, tag = 'input window, operand 2, single buffered']
    #allocation8 [shape = 'u8[98304]{0}', space=vmem, size = 0x18000, scoped, tag = 'input window, operand 3, single buffered']
    #allocation9 [shape = 's32[1]{0}', space=sflag, size = 0x4, scoped, tag = 'scoped memory for tpu_custom_call.1']
    #allocation10 [shape = 'u8[32768]{0}', space=vmem, size = 0x8000, scoped, tag = 'input window, operand 5, single buffered']
    #allocation11 [shape = 'u8[512]{0}', space=vmem, size = 0x400, scoped, tag = 'input window, operand 6, single buffered']
    #allocation12 [shape = 's32[1]{0}', space=sflag, size = 0x4, scoped, tag = 'scoped memory for tpu_custom_call.1']
    #allocation13 [shape = 'u8[512]{0}', space=vmem, size = 0x400, scoped, tag = 'input window, operand 7, single buffered']
    #allocation14 [shape = 'u8[512]{0}', space=vmem, size = 0x400, scoped, tag = 'input window, operand 8, single buffered']
    #allocation15 [shape = 's32[1]{0}', space=sflag, size = 0x4, scoped, tag = 'scoped memory for tpu_custom_call.1']
    #allocation16 [shape = 'u8[131072]{0}', space=vmem, size = 0x20000, scoped, tag = 'input window, operand 9, single buffered']
    #allocation17 [shape = 'u8[131072]{0}', space=vmem, size = 0x20000, scoped, tag = 'input window, operand 11, single buffered']
    #allocation18 [shape = 's32[1]{0}', space=sflag, size = 0x4, scoped, tag = 'scoped memory for tpu_custom_call.1']
    #allocation19 [shape = 'u8[16384]{0}', space=vmem, size = 0x4000, scoped, tag = 'output window, operand 0']
    %18 = vsyncpa [#allocation3], 0
    %s19 = scalar_lea.sflag [#allocation3], 1
    %20 = vsyncpa %s19, 0
    %21 = vsyncpa [#allocation6], 0
    %22 = vsyncpa [#allocation9], 0
    %23 = vsyncpa [#allocation12], 0
    %24 = vsyncpa [#allocation15], 0
    %25 = vsyncpa [#allocation18], 0
    %26 = vsyncpa [#allocation4], 0
    %s27 = scalar_lea.sflag [#allocation4], 1
    %28 = vsyncpa %s27, 0
    loop: start=0, step=1, limit=4
    $region2: #{tpu_custom_call.1} parent=1 // loop_pre_header
      _
    $region3: #{tpu_custom_call.1} parent=1 // loop_header
      %s30 = sphi 0, %s34
      %p31 = scmp.ge.s32.totalorder %s30, 4
      %s40 = sphi 0, %s42
      %s43 = sphi 0, %s40
      %s44 = sphi 0, %s43
      %s60 = sphi 0, %s44
      %s64 = sphi 0, %s64
      %s66 = sphi 0, %s64
      %s67 = sphi 0, %s66
      %s81 = sphi 0, %s67
      %s85 = sphi 0, %s85
      %s87 = sphi 0, %s85
      %s88 = sphi 0, %s87
      %s102 = sphi 0, %s88
      %s106 = sphi 0, %s106
      %s108 = sphi 0, %s106
      %s109 = sphi 0, %s108
      %s123 = sphi 0, %s109
      %s127 = sphi 0, %s127
      %s129 = sphi 0, %s127
      %s130 = sphi 0, %s129
      %s144 = sphi 0, %s130
      %s148 = sphi 0, %s148
      %s150 = sphi 0, %s148
      %s151 = sphi 0, %s150
      %s165 = sphi 0, %s151
      %s169 = sphi 0, %s169
      %s171 = sphi 0, %s169
      %s172 = sphi 0, %s171
      %s186 = sphi 0, %s172
      %s190 = sphi 0, %s190
      %s192 = sphi 0, %s190
      %s193 = sphi 0, %s192
      %s207 = sphi 0, %s193
      %s211 = sphi 0, %s211
      %s213 = sphi 0, %s211
      %s214 = sphi 0, %s213
      %s228 = sphi 0, %s214
      %s232 = sphi 0, %s232
      %s234 = sphi 0, %s232
      %s235 = sphi 0, %s234
      %s249 = sphi 0, %s235
      %s253 = sphi 0, %s253
      %s255 = sphi 0, %s253
      %s256 = sphi 0, %s255
      %s270 = sphi 0, %s256
      %s274 = sphi 0, %s274
      %s276 = sphi 0, %s274
      %s277 = sphi 0, %s276
      %s291 = sphi 0, %s277
      %s295 = sphi 0, %s295
      %s297 = sphi 0, %s295
      %s298 = sphi 0, %s297
      %s312 = sphi 0, %s298
      %s318 = sphi 0, %s320
      %s321 = sphi 0, %s318
      %s322 = sphi 0, %s321
      %s338 = sphi 0, %s322
    $region4: #{tpu_custom_call.1} parent=1 // loop_header_branch
      %33 = sbr.rel (%p31) target = $region8
    $region5: #{tpu_custom_call.1} parent=1 // loop_body
      %s35 = ssub.s32 %s30, 1
      %s36 = ssub.s32 %s30, 2
      %s37 = sadd.s32 %s30, 1
      %s38 = ssub.s32 %s30, %s37
      %p39 = scmp.eq.s32.totalorder %s38, 0
      %s41 = sadd.s32 %s40, 1
      %s42 = scalar_select %p39, %s40, %s41
      %p45 = pneg %p39
      %p46 = scmp.eq.s32.totalorder %s30, 1
      %p47 = por %p45, %p46
      %p48 = scmp.ne.s32.totalorder %s40, %s43
      %p49 = scmp.eq.s32.totalorder %s30, 0
      %p50 = por %p48, %p49
      %p51 = scmp.ne.s32.totalorder %s40, %s43
      %p52 = scmp.eq.s32.totalorder %s35, 1
      %p53 = por %p51, %p52
      %p54 = scmp.ne.s32.totalorder %s43, %s44
      %p55 = scmp.eq.s32.totalorder %s35, 0
      %p56 = por %p54, %p55
      %p57 = scmp.ne.s32.totalorder %s43, %s44
      %p58 = scmp.eq.s32.totalorder %s36, 1
      %p59 = por %p57, %p58
      %p61 = scmp.ne.s32.totalorder %s44, %s60
      %p62 = scmp.eq.s32.totalorder %s36, 0
      %p63 = por %p61, %p62
      %s65 = sadd.s32 %s64, 1
      %p68 = scmp.eq.s32.totalorder %s30, 1
      %p69 = scmp.ne.s32.totalorder %s64, %s66
      %p70 = scmp.eq.s32.totalorder %s30, 0
      %p71 = por %p69, %p70
      %p72 = scmp.ne.s32.totalorder %s64, %s66
      %p73 = scmp.eq.s32.totalorder %s35, 1
      %p74 = por %p72, %p73
      %p75 = scmp.ne.s32.totalorder %s66, %s67
      %p76 = scmp.eq.s32.totalorder %s35, 0
      %p77 = por %p75, %p76
      %p78 = scmp.ne.s32.totalorder %s66, %s67
      %p79 = scmp.eq.s32.totalorder %s36, 1
      %p80 = por %p78, %p79
      %p82 = scmp.ne.s32.totalorder %s67, %s81
      %p83 = scmp.eq.s32.totalorder %s36, 0
      %p84 = por %p82, %p83
      %s86 = sadd.s32 %s85, 1
      %p89 = scmp.eq.s32.totalorder %s30, 1
      %p90 = scmp.ne.s32.totalorder %s85, %s87
      %p91 = scmp.eq.s32.totalorder %s30, 0
      %p92 = por %p90, %p91
      %p93 = scmp.ne.s32.totalorder %s85, %s87
      %p94 = scmp.eq.s32.totalorder %s35, 1
      %p95 = por %p93, %p94
      %p96 = scmp.ne.s32.totalorder %s87, %s88
      %p97 = scmp.eq.s32.totalorder %s35, 0
      %p98 = por %p96, %p97
      %p99 = scmp.ne.s32.totalorder %s87, %s88
      %p100 = scmp.eq.s32.totalorder %s36, 1
      %p101 = por %p99, %p100
      %p103 = scmp.ne.s32.totalorder %s88, %s102
      %p104 = scmp.eq.s32.totalorder %s36, 0
      %p105 = por %p103, %p104
      %s107 = sadd.s32 %s106, 1
      %p110 = scmp.eq.s32.totalorder %s30, 1
      %p111 = scmp.ne.s32.totalorder %s106, %s108
      %p112 = scmp.eq.s32.totalorder %s30, 0
      %p113 = por %p111, %p112
      %p114 = scmp.ne.s32.totalorder %s106, %s108
      %p115 = scmp.eq.s32.totalorder %s35, 1
      %p116 = por %p114, %p115
      %p117 = scmp.ne.s32.totalorder %s108, %s109
      %p118 = scmp.eq.s32.totalorder %s35, 0
      %p119 = por %p117, %p118
      %p120 = scmp.ne.s32.totalorder %s108, %s109
      %p121 = scmp.eq.s32.totalorder %s36, 1
      %p122 = por %p120, %p121
      %p124 = scmp.ne.s32.totalorder %s109, %s123
      %p125 = scmp.eq.s32.totalorder %s36, 0
      %p126 = por %p124, %p125
      %s128 = sadd.s32 %s127, 1
      %p131 = scmp.eq.s32.totalorder %s30, 1
      %p132 = scmp.ne.s32.totalorder %s127, %s129
      %p133 = scmp.eq.s32.totalorder %s30, 0
      %p134 = por %p132, %p133
      %p135 = scmp.ne.s32.totalorder %s127, %s129
      %p136 = scmp.eq.s32.totalorder %s35, 1
      %p137 = por %p135, %p136
      %p138 = scmp.ne.s32.totalorder %s129, %s130
      %p139 = scmp.eq.s32.totalorder %s35, 0
      %p140 = por %p138, %p139
      %p141 = scmp.ne.s32.totalorder %s129, %s130
      %p142 = scmp.eq.s32.totalorder %s36, 1
      %p143 = por %p141, %p142
      %p145 = scmp.ne.s32.totalorder %s130, %s144
      %p146 = scmp.eq.s32.totalorder %s36, 0
      %p147 = por %p145, %p146
      %s149 = sadd.s32 %s148, 1
      %p152 = scmp.eq.s32.totalorder %s30, 1
      %p153 = scmp.ne.s32.totalorder %s148, %s150
      %p154 = scmp.eq.s32.totalorder %s30, 0
      %p155 = por %p153, %p154
      %p156 = scmp.ne.s32.totalorder %s148, %s150
      %p157 = scmp.eq.s32.totalorder %s35, 1
      %p158 = por %p156, %p157
      %p159 = scmp.ne.s32.totalorder %s150, %s151
      %p160 = scmp.eq.s32.totalorder %s35, 0
      %p161 = por %p159, %p160
      %p162 = scmp.ne.s32.totalorder %s150, %s151
      %p163 = scmp.eq.s32.totalorder %s36, 1
      %p164 = por %p162, %p163
      %p166 = scmp.ne.s32.totalorder %s151, %s165
      %p167 = scmp.eq.s32.totalorder %s36, 0
      %p168 = por %p166, %p167
      %s170 = sadd.s32 %s169, 1
      %p173 = scmp.eq.s32.totalorder %s30, 1
      %p174 = scmp.ne.s32.totalorder %s169, %s171
      %p175 = scmp.eq.s32.totalorder %s30, 0
      %p176 = por %p174, %p175
      %p177 = scmp.ne.s32.totalorder %s169, %s171
      %p178 = scmp.eq.s32.totalorder %s35, 1
      %p179 = por %p177, %p178
      %p180 = scmp.ne.s32.totalorder %s171, %s172
      %p181 = scmp.eq.s32.totalorder %s35, 0
      %p182 = por %p180, %p181
      %p183 = scmp.ne.s32.totalorder %s171, %s172
      %p184 = scmp.eq.s32.totalorder %s36, 1
      %p185 = por %p183, %p184
      %p187 = scmp.ne.s32.totalorder %s172, %s186
      %p188 = scmp.eq.s32.totalorder %s36, 0
      %p189 = por %p187, %p188
      %s191 = sadd.s32 %s190, 1
      %p194 = scmp.eq.s32.totalorder %s30, 1
      %p195 = scmp.ne.s32.totalorder %s190, %s192
      %p196 = scmp.eq.s32.totalorder %s30, 0
      %p197 = por %p195, %p196
      %p198 = scmp.ne.s32.totalorder %s190, %s192
      %p199 = scmp.eq.s32.totalorder %s35, 1
      %p200 = por %p198, %p199
      %p201 = scmp.ne.s32.totalorder %s192, %s193
      %p202 = scmp.eq.s32.totalorder %s35, 0
      %p203 = por %p201, %p202
      %p204 = scmp.ne.s32.totalorder %s192, %s193
      %p205 = scmp.eq.s32.totalorder %s36, 1
      %p206 = por %p204, %p205
      %p208 = scmp.ne.s32.totalorder %s193, %s207
      %p209 = scmp.eq.s32.totalorder %s36, 0
      %p210 = por %p208, %p209
      %s212 = sadd.s32 %s211, 1
      %p215 = scmp.eq.s32.totalorder %s30, 1
      %p216 = scmp.ne.s32.totalorder %s211, %s213
      %p217 = scmp.eq.s32.totalorder %s30, 0
      %p218 = por %p216, %p217
      %p219 = scmp.ne.s32.totalorder %s211, %s213
      %p220 = scmp.eq.s32.totalorder %s35, 1
      %p221 = por %p219, %p220
      %p222 = scmp.ne.s32.totalorder %s213, %s214
      %p223 = scmp.eq.s32.totalorder %s35, 0
      %p224 = por %p222, %p223
      %p225 = scmp.ne.s32.totalorder %s213, %s214
      %p226 = scmp.eq.s32.totalorder %s36, 1
      %p227 = por %p225, %p226
      %p229 = scmp.ne.s32.totalorder %s214, %s228
      %p230 = scmp.eq.s32.totalorder %s36, 0
      %p231 = por %p229, %p230
      %s233 = sadd.s32 %s232, 1
      %p236 = scmp.eq.s32.totalorder %s30, 1
      %p237 = scmp.ne.s32.totalorder %s232, %s234
      %p238 = scmp.eq.s32.totalorder %s30, 0
      %p239 = por %p237, %p238
      %p240 = scmp.ne.s32.totalorder %s232, %s234
      %p241 = scmp.eq.s32.totalorder %s35, 1
      %p242 = por %p240, %p241
      %p243 = scmp.ne.s32.totalorder %s234, %s235
      %p244 = scmp.eq.s32.totalorder %s35, 0
      %p245 = por %p243, %p244
      %p246 = scmp.ne.s32.totalorder %s234, %s235
      %p247 = scmp.eq.s32.totalorder %s36, 1
      %p248 = por %p246, %p247
      %p250 = scmp.ne.s32.totalorder %s235, %s249
      %p251 = scmp.eq.s32.totalorder %s36, 0
      %p252 = por %p250, %p251
      %s254 = sadd.s32 %s253, 1
      %p257 = scmp.eq.s32.totalorder %s30, 1
      %p258 = scmp.ne.s32.totalorder %s253, %s255
      %p259 = scmp.eq.s32.totalorder %s30, 0
      %p260 = por %p258, %p259
      %p261 = scmp.ne.s32.totalorder %s253, %s255
      %p262 = scmp.eq.s32.totalorder %s35, 1
      %p263 = por %p261, %p262
      %p264 = scmp.ne.s32.totalorder %s255, %s256
      %p265 = scmp.eq.s32.totalorder %s35, 0
      %p266 = por %p264, %p265
      %p267 = scmp.ne.s32.totalorder %s255, %s256
      %p268 = scmp.eq.s32.totalorder %s36, 1
      %p269 = por %p267, %p268
      %p271 = scmp.ne.s32.totalorder %s256, %s270
      %p272 = scmp.eq.s32.totalorder %s36, 0
      %p273 = por %p271, %p272
      %s275 = sadd.s32 %s274, 1
      %p278 = scmp.eq.s32.totalorder %s30, 1
      %p279 = scmp.ne.s32.totalorder %s274, %s276
      %p280 = scmp.eq.s32.totalorder %s30, 0
      %p281 = por %p279, %p280
      %p282 = scmp.ne.s32.totalorder %s274, %s276
      %p283 = scmp.eq.s32.totalorder %s35, 1
      %p284 = por %p282, %p283
      %p285 = scmp.ne.s32.totalorder %s276, %s277
      %p286 = scmp.eq.s32.totalorder %s35, 0
      %p287 = por %p285, %p286
      %p288 = scmp.ne.s32.totalorder %s276, %s277
      %p289 = scmp.eq.s32.totalorder %s36, 1
      %p290 = por %p288, %p289
      %p292 = scmp.ne.s32.totalorder %s277, %s291
      %p293 = scmp.eq.s32.totalorder %s36, 0
      %p294 = por %p292, %p293
      %s296 = sadd.s32 %s295, 1
      %p299 = scmp.eq.s32.totalorder %s30, 1
      %p300 = scmp.ne.s32.totalorder %s295, %s297
      %p301 = scmp.eq.s32.totalorder %s30, 0
      %p302 = por %p300, %p301
      %p303 = scmp.ne.s32.totalorder %s295, %s297
      %p304 = scmp.eq.s32.totalorder %s35, 1
      %p305 = por %p303, %p304
      %p306 = scmp.ne.s32.totalorder %s297, %s298
      %p307 = scmp.eq.s32.totalorder %s35, 0
      %p308 = por %p306, %p307
      %p309 = scmp.ne.s32.totalorder %s297, %s298
      %p310 = scmp.eq.s32.totalorder %s36, 1
      %p311 = por %p309, %p310
      %p313 = scmp.ne.s32.totalorder %s298, %s312
      %p314 = scmp.eq.s32.totalorder %s36, 0
      %p315 = por %p313, %p314
      %s316 = ssub.s32 %s30, %s37
      %p317 = scmp.eq.s32.totalorder %s316, 0
      %s319 = sadd.s32 %s318, 1
      %s320 = scalar_select %p317, %s318, %s319
      %p323 = pneg %p317
      %p324 = scmp.eq.s32.totalorder %s30, 1
      %p325 = por %p323, %p324
      %p326 = scmp.ne.s32.totalorder %s318, %s321
      %p327 = scmp.eq.s32.totalorder %s30, 0
      %p328 = por %p326, %p327
      %p329 = scmp.ne.s32.totalorder %s318, %s321
      %p330 = scmp.eq.s32.totalorder %s35, 1
      %p331 = por %p329, %p330
      %p332 = scmp.ne.s32.totalorder %s321, %s322
      %p333 = scmp.eq.s32.totalorder %s35, 0
      %p334 = por %p332, %p333
      %p335 = scmp.ne.s32.totalorder %s321, %s322
      %p336 = scmp.eq.s32.totalorder %s36, 1
      %p337 = por %p335, %p336
      %p339 = scmp.ne.s32.totalorder %s322, %s338
      %p340 = scmp.eq.s32.totalorder %s36, 0
      %p341 = por %p339, %p340
      %p342 = scmp.le.s32.totalorder 1, %s30
      %p343 = scmp.lt.s32.totalorder %s30, 3
      %p344 = pnand %p342, %p343
      %p345 = pneg %p344
      // Predicated region
      $region9: #{tpu_custom_call.1} parent=5 // pred_check
        _
      $region10: #{tpu_custom_call.1} parent=5 // pred_check_branch
        %347 = sbr.rel (%p344) target = $region12
      $region11: #{tpu_custom_call.1} parent=5 // pred_region
        %s348 = ssub.s32 %s30, 1
        // Predicated region
        $region13: #{tpu_custom_call.1} parent=11 // pred_check
          %p349 = pneg %p77
        $region14: #{tpu_custom_call.1} parent=11 // pred_check_branch
          %351 = sbr.rel (%p349) target = $region16
        $region15: #{tpu_custom_call.1} parent=11 // pred_region
          %353 = vsyncadd [#allocation6], 0
          %s355 = sshll.u32 %s1, 4
          %s356 = int_to_ptr.hbm [resolvable:$true] %s355
          %s357 = sshll.u32 [#allocation5], 4
          %s358 = int_to_ptr.vmem [resolvable:$true] %s357
          %360 = dma.hbm_to_vmem [thread:$0]  %s356, 16, %s358, [#allocation6]
        $region16: #{tpu_custom_call.1} parent=11 // pred_fallthru
          _
        // Predicated region
        $region17: #{tpu_custom_call.1} parent=11 // pred_check
          %p361 = pneg %p98
        $region18: #{tpu_custom_call.1} parent=11 // pred_check_branch
          %363 = sbr.rel (%p361) target = $region20
        $region19: #{tpu_custom_call.1} parent=11 // pred_region
          %365 = vsyncadd [#allocation6], 0
          %s367 = sshll.u32 %s2, 4
          %s368 = int_to_ptr.hbm [resolvable:$true] %s367
          %s369 = sshll.u32 [#allocation7], 4
          %s370 = int_to_ptr.vmem [resolvable:$true] %s369
          %372 = dma.hbm_to_vmem [thread:$0]  %s368, 16, %s370, [#allocation6]
        $region20: #{tpu_custom_call.1} parent=11 // pred_fallthru
          _
        // Predicated region
        $region21: #{tpu_custom_call.1} parent=11 // pred_check
          %p373 = pneg %p119
        $region22: #{tpu_custom_call.1} parent=11 // pred_check_branch
          %375 = sbr.rel (%p373) target = $region24
        $region23: #{tpu_custom_call.1} parent=11 // pred_region
          %377 = vsyncadd [#allocation9], 0
          %s378 = sshll.u32 %s3, 4
          %s379 = int_to_ptr.hbm [resolvable:$true] %s378
          %s380 = sshll.u32 [#allocation8], 4
          %s381 = int_to_ptr.vmem [resolvable:$true] %s380
          %386 = dma.hbm_to_vmem [thread:$0]  %s379, 3072, %s381, [#allocation9], 192, 192, 12
        $region24: #{tpu_custom_call.1} parent=11 // pred_fallthru
          _
        // Predicated region
        $region25: #{tpu_custom_call.1} parent=11 // pred_check
          %p387 = pneg %p140
        $region26: #{tpu_custom_call.1} parent=11 // pred_check_branch
          %389 = sbr.rel (%p387) target = $region28
        $region27: #{tpu_custom_call.1} parent=11 // pred_region
          _
        $region28: #{tpu_custom_call.1} parent=11 // pred_fallthru
          _
        // Predicated region
        $region29: #{tpu_custom_call.1} parent=11 // pred_check
          %p390 = pneg %p161
        $region30: #{tpu_custom_call.1} parent=11 // pred_check_branch
          %392 = sbr.rel (%p390) target = $region32
        $region31: #{tpu_custom_call.1} parent=11 // pred_region
          %394 = vsyncadd [#allocation9], 0
          %s395 = sshll.u32 %s5, 4
          %s396 = int_to_ptr.hbm [resolvable:$true] %s395
          %s397 = sshll.u32 [#allocation10], 4
          %s398 = int_to_ptr.vmem [resolvable:$true] %s397
          %403 = dma.hbm_to_vmem [thread:$0]  %s396, 1024, %s398, [#allocation9], 64, 64, 4
        $region32: #{tpu_custom_call.1} parent=11 // pred_fallthru
          _
        // Predicated region
        $region33: #{tpu_custom_call.1} parent=11 // pred_check
          %p404 = pneg %p182
        $region34: #{tpu_custom_call.1} parent=11 // pred_check_branch
          %406 = sbr.rel (%p404) target = $region36
        $region35: #{tpu_custom_call.1} parent=11 // pred_region
          %408 = vsyncadd [#allocation12], 0
          %s410 = sshll.u32 %s6, 4
          %s411 = int_to_ptr.hbm [resolvable:$true] %s410
          %s412 = sshll.u32 [#allocation11], 4
          %s413 = int_to_ptr.vmem [resolvable:$true] %s412
          %415 = dma.hbm_to_vmem [thread:$0]  %s411, 16, %s413, [#allocation12]
        $region36: #{tpu_custom_call.1} parent=11 // pred_fallthru
          _
        // Predicated region
        $region37: #{tpu_custom_call.1} parent=11 // pred_check
          %p416 = pneg %p203
        $region38: #{tpu_custom_call.1} parent=11 // pred_check_branch
          %418 = sbr.rel (%p416) target = $region40
        $region39: #{tpu_custom_call.1} parent=11 // pred_region
          %420 = vsyncadd [#allocation12], 0
          %s422 = sshll.u32 %s7, 4
          %s423 = int_to_ptr.hbm [resolvable:$true] %s422
          %s424 = sshll.u32 [#allocation13], 4
          %s425 = int_to_ptr.vmem [resolvable:$true] %s424
          %427 = dma.hbm_to_vmem [thread:$0]  %s423, 16, %s425, [#allocation12]
        $region40: #{tpu_custom_call.1} parent=11 // pred_fallthru
          _
        // Predicated region
        $region41: #{tpu_custom_call.1} parent=11 // pred_check
          %p428 = pneg %p224
        $region42: #{tpu_custom_call.1} parent=11 // pred_check_branch
          %430 = sbr.rel (%p428) target = $region44
        $region43: #{tpu_custom_call.1} parent=11 // pred_region
          %432 = vsyncadd [#allocation15], 0
          %s434 = sshll.u32 %s8, 4
          %s435 = int_to_ptr.hbm [resolvable:$true] %s434
          %s436 = sshll.u32 [#allocation14], 4
          %s437 = int_to_ptr.vmem [resolvable:$true] %s436
          %439 = dma.hbm_to_vmem [thread:$0]  %s435, 16, %s437, [#allocation15]
        $region44: #{tpu_custom_call.1} parent=11 // pred_fallthru
          _
        // Predicated region
        $region45: #{tpu_custom_call.1} parent=11 // pred_check
          %p440 = pneg %p245
        $region46: #{tpu_custom_call.1} parent=11 // pred_check_branch
          %442 = sbr.rel (%p440) target = $region48
        $region47: #{tpu_custom_call.1} parent=11 // pred_region
          %444 = vsyncadd [#allocation15], 0
          %s445 = sshll.u32 %s9, 4
          %s446 = int_to_ptr.hbm [resolvable:$true] %s445
          %s447 = sshll.u32 [#allocation16], 4
          %s448 = int_to_ptr.vmem [resolvable:$true] %s447
          %453 = dma.hbm_to_vmem [thread:$0]  %s446, 4096, %s448, [#allocation15], 256, 256, 16
        $region48: #{tpu_custom_call.1} parent=11 // pred_fallthru
          _
        // Predicated region
        $region49: #{tpu_custom_call.1} parent=11 // pred_check
          %p454 = pneg %p266
        $region50: #{tpu_custom_call.1} parent=11 // pred_check_branch
          %456 = sbr.rel (%p454) target = $region52
        $region51: #{tpu_custom_call.1} parent=11 // pred_region
          _
        $region52: #{tpu_custom_call.1} parent=11 // pred_fallthru
          _
        // Predicated region
        $region53: #{tpu_custom_call.1} parent=11 // pred_check
          %p457 = pneg %p287
        $region54: #{tpu_custom_call.1} parent=11 // pred_check_branch
          %459 = sbr.rel (%p457) target = $region56
        $region55: #{tpu_custom_call.1} parent=11 // pred_region
          %461 = vsyncadd [#allocation18], 0
          %s462 = sshll.u32 %s11, 4
          %s463 = int_to_ptr.hbm [resolvable:$true] %s462
          %s464 = sshll.u32 [#allocation17], 4
          %s465 = int_to_ptr.vmem [resolvable:$true] %s464
          %470 = dma.hbm_to_vmem [thread:$0]  %s463, 4096, %s465, [#allocation18], 64, 64, 4
        $region56: #{tpu_custom_call.1} parent=11 // pred_fallthru
          _
        // Predicated region
        $region57: #{tpu_custom_call.1} parent=11 // pred_check
          %p471 = pneg %p308
        $region58: #{tpu_custom_call.1} parent=11 // pred_check_branch
          %473 = sbr.rel (%p471) target = $region60
        $region59: #{tpu_custom_call.1} parent=11 // pred_region
          _
        $region60: #{tpu_custom_call.1} parent=11 // pred_fallthru
          _
      $region12: #{tpu_custom_call.1} parent=5 // pred_fallthru
        _
      %p474 = scmp.lt.s32.totalorder %s30, 2
      // Predicated region
      $region61: #{tpu_custom_call.1} parent=5 // pred_check
        %p475 = pneg %p474
      $region62: #{tpu_custom_call.1} parent=5 // pred_check_branch
        %477 = sbr.rel (%p475) target = $region64
      $region63: #{tpu_custom_call.1} parent=5 // pred_region
        // Predicated region
        $region65: #{tpu_custom_call.1} parent=63 // pred_check
          %p478 = pneg %p50
        $region66: #{tpu_custom_call.1} parent=63 // pred_check_branch
          %480 = sbr.rel (%p478) target = $region68
        $region67: #{tpu_custom_call.1} parent=63 // pred_region
          %s481 = sand.u32 %s40, 1
          %s482 = scalar_lea.sflag [#allocation3], %s481
          %s483 = sand.u32 %s40, 1
          %s484 = smul.addr %s483, 16
          %s485 = scalar_lea.vmem [#allocation2], %s484
          %487 = vsyncadd %s482, 0
          %s488 = smul.addr %s30, 2
          %s489 = smul.addr %s488, 8
          %s490 = scalar_lea.hbm %s0, %s489
          %s491 = sshll.u32 %s490, 4
          %s492 = int_to_ptr.hbm [resolvable:$true] %s491
          %s493 = sshll.u32 %s485, 4
          %s494 = int_to_ptr.vmem [resolvable:$true] %s493
          %499 = dma.hbm_to_vmem [thread:$0]  %s492, 256, %s494, %s482, 128, 128, 8
        $region68: #{tpu_custom_call.1} parent=63 // pred_fallthru
          _
      $region64: #{tpu_custom_call.1} parent=5 // pred_fallthru
        _
      %p500 = scmp.le.s32.totalorder 1, %s30
      %p501 = scmp.lt.s32.totalorder %s30, 3
      %p502 = pnand %p500, %p501
      %p503 = pneg %p502
      // Predicated region
      $region69: #{tpu_custom_call.1} parent=5 // pred_check
        _
      $region70: #{tpu_custom_call.1} parent=5 // pred_check_branch
        %505 = sbr.rel (%p502) target = $region72
      $region71: #{tpu_custom_call.1} parent=5 // pred_region
        %s506 = ssub.s32 %s30, 1
        %s507 = sand.u32 %s43, 1
        %s508 = scalar_lea.sflag [#allocation3], %s507
        %s509 = sand.u32 %s43, 1
        %s510 = smul.addr %s509, 16
        %s511 = scalar_lea.vmem [#allocation2], %s510
        // Predicated region
        $region73: #{tpu_custom_call.1} parent=71 // pred_check
          %p512 = pneg %p56
        $region74: #{tpu_custom_call.1} parent=71 // pred_check_branch
          %514 = sbr.rel (%p512) target = $region76
        $region75: #{tpu_custom_call.1} parent=71 // pred_region
          %516 = dma.done %s508, 256
        $region76: #{tpu_custom_call.1} parent=71 // pred_fallthru
          _
        // Predicated region
        $region77: #{tpu_custom_call.1} parent=71 // pred_check
          %p517 = pneg %p77
        $region78: #{tpu_custom_call.1} parent=71 // pred_check_branch
          %519 = sbr.rel (%p517) target = $region80
        $region79: #{tpu_custom_call.1} parent=71 // pred_region
          %521 = dma.done [#allocation6], 16
        $region80: #{tpu_custom_call.1} parent=71 // pred_fallthru
          _
        // Predicated region
        $region81: #{tpu_custom_call.1} parent=71 // pred_check
          %p522 = pneg %p98
        $region82: #{tpu_custom_call.1} parent=71 // pred_check_branch
          %524 = sbr.rel (%p522) target = $region84
        $region83: #{tpu_custom_call.1} parent=71 // pred_region
          %526 = dma.done [#allocation6], 16
        $region84: #{tpu_custom_call.1} parent=71 // pred_fallthru
          _
        // Predicated region
        $region85: #{tpu_custom_call.1} parent=71 // pred_check
          %p527 = pneg %p119
        $region86: #{tpu_custom_call.1} parent=71 // pred_check_branch
          %529 = sbr.rel (%p527) target = $region88
        $region87: #{tpu_custom_call.1} parent=71 // pred_region
          %531 = dma.done [#allocation9], 3072
        $region88: #{tpu_custom_call.1} parent=71 // pred_fallthru
          _
        // Predicated region
        $region89: #{tpu_custom_call.1} parent=71 // pred_check
          %p532 = pneg %p161
        $region90: #{tpu_custom_call.1} parent=71 // pred_check_branch
          %534 = sbr.rel (%p532) target = $region92
        $region91: #{tpu_custom_call.1} parent=71 // pred_region
          %536 = dma.done [#allocation9], 1024
        $region92: #{tpu_custom_call.1} parent=71 // pred_fallthru
          _
        // Predicated region
        $region93: #{tpu_custom_call.1} parent=71 // pred_check
          %p537 = pneg %p182
        $region94: #{tpu_custom_call.1} parent=71 // pred_check_branch
          %539 = sbr.rel (%p537) target = $region96
        $region95: #{tpu_custom_call.1} parent=71 // pred_region
          %541 = dma.done [#allocation12], 16
        $region96: #{tpu_custom_call.1} parent=71 // pred_fallthru
          _
        // Predicated region
        $region97: #{tpu_custom_call.1} parent=71 // pred_check
          %p542 = pneg %p203
        $region98: #{tpu_custom_call.1} parent=71 // pred_check_branch
          %544 = sbr.rel (%p542) target = $region100
        $region99: #{tpu_custom_call.1} parent=71 // pred_region
          %546 = dma.done [#allocation12], 16
        $region100: #{tpu_custom_call.1} parent=71 // pred_fallthru
          _
        // Predicated region
        $region101: #{tpu_custom_call.1} parent=71 // pred_check
          %p547 = pneg %p224
        $region102: #{tpu_custom_call.1} parent=71 // pred_check_branch
          %549 = sbr.rel (%p547) target = $region104
        $region103: #{tpu_custom_call.1} parent=71 // pred_region
          %551 = dma.done [#allocation15], 16
        $region104: #{tpu_custom_call.1} parent=71 // pred_fallthru
          _
        // Predicated region
        $region105: #{tpu_custom_call.1} parent=71 // pred_check
          %p552 = pneg %p245
        $region106: #{tpu_custom_call.1} parent=71 // pred_check_branch
          %554 = sbr.rel (%p552) target = $region108
        $region107: #{tpu_custom_call.1} parent=71 // pred_region
          %556 = dma.done [#allocation15], 4096
        $region108: #{tpu_custom_call.1} parent=71 // pred_fallthru
          _
        // Predicated region
        $region109: #{tpu_custom_call.1} parent=71 // pred_check
          %p557 = pneg %p287
        $region110: #{tpu_custom_call.1} parent=71 // pred_check_branch
          %559 = sbr.rel (%p557) target = $region112
        $region111: #{tpu_custom_call.1} parent=71 // pred_region
          %561 = dma.done [#allocation18], 4096
        $region112: #{tpu_custom_call.1} parent=71 // pred_fallthru
          _
        %s562 = sand.u32 %s43, 1
        %s563 = scalar_lea.sflag [#allocation3], %s562
        %s564 = sand.u32 %s43, 1
        %s565 = smul.addr %s564, 16
        %s566 = scalar_lea.vmem [#allocation2], %s565
        %p567 = pneg %p56
        %p568 = pneg %p53
        %p569 = pneg %p77
        %p570 = pneg %p74
        %p571 = pneg %p98
        %p572 = pneg %p95
        %p573 = pneg %p119
        %p574 = pneg %p116
        %p575 = pneg %p140
        %p576 = pneg %p137
        %p577 = pneg %p161
        %p578 = pneg %p158
        %p579 = pneg %p182
        %p580 = pneg %p179
        %p581 = pneg %p203
        %p582 = pneg %p200
        %p583 = pneg %p224
        %p584 = pneg %p221
        %p585 = pneg %p245
        %p586 = pneg %p242
        %p587 = pneg %p266
        %p588 = pneg %p263
        %p589 = pneg %p287
        %p590 = pneg %p284
        %p591 = pneg %p308
        %p592 = pneg %p305
        %p593 = pneg %p334
        %p594 = pneg %p331
        %s595 = sand.u32 %s321, 1
        %s596 = scalar_lea.sflag [#allocation4], %s595
        %s597 = sand.u32 %s321, 1
        %s598 = smul.addr %s597, 16
        %s599 = scalar_lea.vmem [#allocation19], %s598
        %v601 = vld [vmem:[%s511] sm:$0xff]
        %v602 = vld [vmem:[%s511 + $0x8] sm:$0xff]
        %v603 = vld [vmem:[#allocation5] sm:$0x1]
        %v604 = vld [vmem:[#allocation7] sm:$0x1]
        %605 = vadd.xlane.f32.xlu0 %v601
        %v606 = vpop.xlane.xlu0 %605
        %607 = vadd.xlane.f32.xlu0 %v602
        %v608 = vpop.xlane.xlu0 %607
        %v609 = vrcp.pop 128.0
        %v610 = vmul.f32 128.0, %v609
        %v611 = vsub.f32 1.0, %v610
        %v612 = vmul.f32 %v609, %v611
        %v613 = vadd.f32 %v609, %v612
        %vm614 = vweird.f32 %v609
        %v615 = vsel %vm614, %v609, %v613
        %v616 = vmul.f32 %v606, %v615
        %v617 = vmul.f32 %v608, %v615
        %v618 = vsub.f32 %v601, %v616
        %v619 = vsub.f32 %v602, %v617
        %v620 = vmul.f32 %v618, %v618
        %v621 = vmul.f32 %v619, %v619
        %622 = vadd.xlane.f32.xlu0 %v620
        %v623 = vpop.xlane.xlu0 %622
        %624 = vadd.xlane.f32.xlu0 %v621
        %v625 = vpop.xlane.xlu0 %624
        %v626 = vmul.f32 %v623, %v615
        %v627 = vmul.f32 %v625, %v615
        %v628 = vadd.f32 %v626, 1e-05
        %v629 = vadd.f32 %v627, 1e-05
        %v630 = vrsqrt.pop %v628
        %v631 = vmul.f32 %v630, %v628
        %v632 = vmul.f32 %v631, %v630
        %v633 = vmul.f32 0.5, %v632
        %v634 = vsub.f32 1.5, %v633
        %v635 = vmul.f32 %v630, %v634
        %vm636 = vweird.f32 %v628
        %vm637 = vweird.f32 %v630
        %vm638 = vmor %vm636, %vm637
        %v639 = vsel %vm638, %v630, %v635
        %v640 = vrsqrt.pop %v629
        %v641 = vmul.f32 %v640, %v629
        %v642 = vmul.f32 %v641, %v640
        %v643 = vmul.f32 0.5, %v642
        %v644 = vsub.f32 1.5, %v643
        %v645 = vmul.f32 %v640, %v644
        %vm646 = vweird.f32 %v629
        %vm647 = vweird.f32 %v640
        %vm648 = vmor %vm646, %vm647
        %v649 = vsel %vm648, %v640, %v645
        %v650 = vmul.f32 %v618, %v639
        %v651 = vmul.f32 %v619, %v649
        %v653 = vperm.slane %v603, 0
        %v655 = vmul.f32 %v650, %v653
        %v656 = vmul.f32 %v651, %v653
        %v658 = vperm.slane %v604, 0
        %v660 = vadd.f32 %v655, %v658
        %v661 = vadd.f32 %v656, %v658
        %v662 = vpack.c.bf16 %v661, %v660
        %v663 = vld [vmem:[#allocation8] sm:$0xff]
        %v664 = vld [vmem:[#allocation8 + $0x8] sm:$0xf]
        %v665 = vld [vmem:[#allocation8 + $0xc] sm:$0xff]
        %v666 = vld [vmem:[#allocation8 + $0x14] sm:$0xf]
        %v667 = vld [vmem:[#allocation8 + $0x18] sm:$0xff]
        %v668 = vld [vmem:[#allocation8 + $0x20] sm:$0xf]
        %v669 = vld [vmem:[#allocation8 + $0x24] sm:$0xff]
        %v670 = vld [vmem:[#allocation8 + $0x2c] sm:$0xf]
        %v671 = vld [vmem:[#allocation8 + $0x30] sm:$0xff]
        %v672 = vld [vmem:[#allocation8 + $0x38] sm:$0xf]
        %v673 = vld [vmem:[#allocation8 + $0x3c] sm:$0xff]
        %v674 = vld [vmem:[#allocation8 + $0x44] sm:$0xf]
        %v675 = vld [vmem:[#allocation8 + $0x48] sm:$0xff]
        %v676 = vld [vmem:[#allocation8 + $0x50] sm:$0xf]
        %v677 = vld [vmem:[#allocation8 + $0x54] sm:$0xff]
        %v678 = vld [vmem:[#allocation8 + $0x5c] sm:$0xf]
        %v679 = vld [vmem:[#allocation8 + $0x60] sm:$0xff]
        %v680 = vld [vmem:[#allocation8 + $0x68] sm:$0xf]
        %v681 = vld [vmem:[#allocation8 + $0x6c] sm:$0xff]
        %v682 = vld [vmem:[#allocation8 + $0x74] sm:$0xf]
        %v683 = vld [vmem:[#allocation8 + $0x78] sm:$0xff]
        %v684 = vld [vmem:[#allocation8 + $0x80] sm:$0xf]
        %v685 = vld [vmem:[#allocation8 + $0x84] sm:$0xff]
        %v686 = vld [vmem:[#allocation8 + $0x8c] sm:$0xf]
        %v687 = vld [vmem:[#allocation8 + $0x90] sm:$0xff]
        %v688 = vld [vmem:[#allocation8 + $0x98] sm:$0xf]
        %v689 = vld [vmem:[#allocation8 + $0x9c] sm:$0xff]
        %v690 = vld [vmem:[#allocation8 + $0xa4] sm:$0xf]
        %v691 = vld [vmem:[#allocation8 + $0xa8] sm:$0xff]
        %v692 = vld [vmem:[#allocation8 + $0xb0] sm:$0xf]
        %v693 = vld [vmem:[#allocation8 + $0xb4] sm:$0xff]
        %v694 = vld [vmem:[#allocation8 + $0xbc] sm:$0xf]
        %v695 = vld [vmem:[%s4] sm:$0x7]
        %v697 = vperm.slane %v695, 0
        %v698 = vperm.slane %v695, 1
        %v699 = vperm.slane %v695, 2
        %v735 = vunpack.c.l.b16 %v663
        %v736 = vunpack.c.h.b16 %v663
        %v737 = vunpack.c.l.b16 %v664
        %v738 = vunpack.c.l.b16 %v665
        %v739 = vunpack.c.h.b16 %v665
        %v740 = vunpack.c.l.b16 %v666
        %v741 = vunpack.c.l.b16 %v667
        %v742 = vunpack.c.h.b16 %v667
        %v743 = vunpack.c.l.b16 %v668
        %v744 = vunpack.c.l.b16 %v669
        %v745 = vunpack.c.h.b16 %v669
        %v746 = vunpack.c.l.b16 %v670
        %v747 = vunpack.c.l.b16 %v671
        %v748 = vunpack.c.h.b16 %v671
        %v749 = vunpack.c.l.b16 %v672
        %v750 = vunpack.c.l.b16 %v673
        %v751 = vunpack.c.h.b16 %v673
        %v752 = vunpack.c.l.b16 %v674
        %v753 = vunpack.c.l.b16 %v675
        %v754 = vunpack.c.h.b16 %v675
        %v755 = vunpack.c.l.b16 %v676
        %v756 = vunpack.c.l.b16 %v677
        %v757 = vunpack.c.h.b16 %v677
        %v758 = vunpack.c.l.b16 %v678
        %v759 = vunpack.c.l.b16 %v679
        %v760 = vunpack.c.h.b16 %v679
        %v761 = vunpack.c.l.b16 %v680
        %v762 = vunpack.c.l.b16 %v681
        %v763 = vunpack.c.h.b16 %v681
        %v764 = vunpack.c.l.b16 %v682
        %v765 = vunpack.c.l.b16 %v683
        %v766 = vunpack.c.h.b16 %v683
        %v767 = vunpack.c.l.b16 %v684
        %v768 = vunpack.c.l.b16 %v685
        %v769 = vunpack.c.h.b16 %v685
        %v770 = vunpack.c.l.b16 %v686
        %v771 = vunpack.c.l.b16 %v687
        %v772 = vunpack.c.h.b16 %v687
        %v773 = vunpack.c.l.b16 %v688
        %v774 = vunpack.c.l.b16 %v689
        %v775 = vunpack.c.h.b16 %v689
        %v776 = vunpack.c.l.b16 %v690
        %v777 = vunpack.c.l.b16 %v691
        %v778 = vunpack.c.h.b16 %v691
        %v779 = vunpack.c.l.b16 %v692
        %v780 = vunpack.c.l.b16 %v693
        %v781 = vunpack.c.h.b16 %v693
        %v782 = vunpack.c.l.b16 %v694
        %v783 = vpack.c.b16 %v738, %v735
        %v784 = vpack.c.b16 %v739, %v736
        %v785 = vpack.c.b16 %v740, %v737
        %v786 = vpack.c.b16 %v744, %v741
        %v787 = vpack.c.b16 %v745, %v742
        %v788 = vpack.c.b16 %v746, %v743
        %v789 = vpack.c.b16 %v750, %v747
        %v790 = vpack.c.b16 %v751, %v748
        %v791 = vpack.c.b16 %v752, %v749
        %v792 = vpack.c.b16 %v756, %v753
        %v793 = vpack.c.b16 %v757, %v754
        %v794 = vpack.c.b16 %v758, %v755
        %v795 = vpack.c.b16 %v762, %v759
        %v796 = vpack.c.b16 %v763, %v760
        %v797 = vpack.c.b16 %v764, %v761
        %v798 = vpack.c.b16 %v768, %v765
        %v799 = vpack.c.b16 %v769, %v766
        %v800 = vpack.c.b16 %v770, %v767
        %v801 = vpack.c.b16 %v774, %v771
        %v802 = vpack.c.b16 %v775, %v772
        %v803 = vpack.c.b16 %v776, %v773
        %v804 = vpack.c.b16 %v780, %v777
        %v805 = vpack.c.b16 %v781, %v778
        %v806 = vpack.c.b16 %v782, %v779
        %831 = vmatpush.bf16.msra.mxu0 %v804
        %832 = vmatpush.bf16.msra.mxu0 %v801
        %833 = vmatpush.bf16.msra.mxu0 %v798
        %834 = vmatpush.bf16.msra.mxu0 %v795
        %835 = vmatpush.bf16.msra.mxu0 %v792
        %836 = vmatpush.bf16.msra.mxu0 %v789
        %837 = vmatpush.bf16.msra.mxu0 %v786
        %838 = vmatpush.bf16.msra.mxu0 %v783
        %839 = vmatmul.bf16.gmra.mxu0 %v662
        %v840 = vpop.f32.mrf.mxu0
        %v841 = vadd.f32 %v697, %v840
        %v842 = vpop.f32.mrf.mxu0
        %v843 = vadd.f32 %v697, %v842
        %844 = vdwg.mxu0
        %845 = vmatpush.bf16.msra.mxu0 %v805
        %846 = vmatpush.bf16.msra.mxu0 %v802
        %847 = vmatpush.bf16.msra.mxu0 %v799
        %848 = vmatpush.bf16.msra.mxu0 %v796
        %849 = vmatpush.bf16.msra.mxu0 %v793
        %850 = vmatpush.bf16.msra.mxu0 %v790
        %851 = vmatpush.bf16.msra.mxu0 %v787
        %852 = vmatpush.bf16.msra.mxu0 %v784
        %853 = vmatmul.bf16.gmra.mxu0 %v662
        %v854 = vpop.f32.mrf.mxu0
        %v855 = vadd.f32 %v698, %v854
        %v856 = vpop.f32.mrf.mxu0
        %v857 = vadd.f32 %v698, %v856
        %858 = vdwg.mxu0
        %859 = vmatpush.bf16.msra.mxu0 %v806
        %860 = vmatpush.bf16.msra.mxu0 %v803
        %861 = vmatpush.bf16.msra.mxu0 %v800
        %862 = vmatpush.bf16.msra.mxu0 %v797
        %863 = vmatpush.bf16.msra.mxu0 %v794
        %864 = vmatpush.bf16.msra.mxu0 %v791
        %865 = vmatpush.bf16.msra.mxu0 %v788
        %866 = vmatpush.bf16.msra.mxu0 %v785
        %867 = vmatmul.bf16.gmra.mxu0 %v662
        %v868 = vpop.f32.mrf.mxu0
        %v869 = vadd.f32 %v699, %v868
        %v870 = vpop.f32.mrf.mxu0
        %v871 = vadd.f32 %v699, %v870
        %872 = vdwg.mxu0
        %v873 = vpack.c.bf16 %v841, %v841
        %v874 = vpack.c.bf16 %v843, %v843
        %v875 = vpack.c.bf16 %v855, %v855
        %v876 = vpack.c.bf16 %v857, %v857
        %v877 = vpack.c.bf16 %v869, %v869
        %v878 = vpack.c.bf16 %v871, %v871
        %v879 = vlaneseq
        %v880 = vshrl.u32 %v879, 7
        %v881 = vadd.s32 %v880, 8
        %v882 = vlaneseq
        %v883 = vand.u32 %v882, 127
        %vm884 = vcmp.ge.s32.totalorder %v880, %v883
        %vm885 = vcmp.ge.s32.totalorder %v881, %v883
        %v886 = vsel %vm884, 0.0, -1e+30
        %v887 = vsel %vm885, 0.0, -1e+30
        %v888 = vld [vmem:[#allocation10] sm:$0xf]
        %v889 = vld [vmem:[#allocation10 + $0x4] sm:$0xf]
        %v890 = vld [vmem:[#allocation10 + $0x8] sm:$0xf]
        %v891 = vld [vmem:[#allocation10 + $0xc] sm:$0xf]
        %v892 = vld [vmem:[#allocation10 + $0x10] sm:$0xf]
        %v893 = vld [vmem:[#allocation10 + $0x14] sm:$0xf]
        %v894 = vld [vmem:[#allocation10 + $0x18] sm:$0xf]
        %v895 = vld [vmem:[#allocation10 + $0x1c] sm:$0xf]
        %v896 = vld [vmem:[#allocation10 + $0x20] sm:$0xf]
        %v897 = vld [vmem:[#allocation10 + $0x24] sm:$0xf]
        %v898 = vld [vmem:[#allocation10 + $0x28] sm:$0xf]
        %v899 = vld [vmem:[#allocation10 + $0x2c] sm:$0xf]
        %v900 = vld [vmem:[#allocation10 + $0x30] sm:$0xf]
        %v901 = vld [vmem:[#allocation10 + $0x34] sm:$0xf]
        %v902 = vld [vmem:[#allocation10 + $0x38] sm:$0xf]
        %v903 = vld [vmem:[#allocation10 + $0x3c] sm:$0xf]
        %v906 = vunpack.c.l.b16 %v873
        %v907 = vunpack.c.l.b16 %v874
        %v908 = vpack.c.b16 %v907, %v906
        %v911 = vunpack.c.l.b16 %v875
        %v912 = vunpack.c.l.b16 %v876
        %v913 = vpack.c.b16 %v912, %v911
        %vm914 = vcmask 261120
        %v916 = vsel %vm914, %v908, 0
        %v919 = vsel %vm914, %v913, 0
        %921 = vmatpush.bf16.xpose.msra.mxu0 0
        %922 = vmatpush.bf16.xpose.msra.mxu0 0
        %923 = vmatpush.bf16.xpose.msra.mxu0 0
        %924 = vmatpush.bf16.xpose.msra.mxu0 0
        %925 = vmatpush.bf16.xpose.msra.mxu0 0
        %926 = vmatpush.bf16.xpose.msra.mxu0 0
        %927 = vmatpush.bf16.xpose.msra.mxu0 0
        %928 = vmatpush.bf16.xpose.msra.mxu0 %v919
        %929 = vmatmul.bf16.gmra.mxu0 %v916
        %v930 = vpop.f32.mrf.mxu0
        %v931 = vadd.f32 0.0, %v930
        %v932 = vpop.f32.mrf.mxu0
        %v933 = vadd.f32 0.0, %v932
        %934 = vdwg.mxu0
        %v935 = vmul.f32 %v931, 0.17677669
        %v936 = vmul.f32 %v933, 0.17677669
        %v937 = vadd.f32 %v935, %v886
        %v938 = vadd.f32 %v936, %v887
        %vm939 = vcmask 130048
        %v940 = vsel %vm939, %v937, -inf
        %941 = vmax.xlane.f32.xlu0 %v940
        %v942 = vpop.xlane.xlu0 %941
        %v943 = vsel %vm939, %v938, -inf
        %944 = vmax.xlane.f32.xlu0 %v943
        %v945 = vpop.xlane.xlu0 %944
        %v946 = vsub.f32 %v937, %v942
        %v947 = vsub.f32 %v938, %v945
        %v948 = vmul.f32 %v946, 1.442695
        %v949 = vpow.pop %v948
        %v950 = vmul.f32 %v947, 1.442695
        %v951 = vpow.pop %v950
        %v952 = vsel %vm939, %v949, 0.0
        %953 = vadd.xlane.f32.xlu0 %v952
        %v954 = vpop.xlane.xlu0 %953
        %v955 = vsel %vm939, %v951, 0.0
        %956 = vadd.xlane.f32.xlu0 %v955
        %v957 = vpop.xlane.xlu0 %956
        %v958 = vpack.c.bf16 %v951, %v949
        %v961 = vunpack.c.l.b16 %v877
        %v962 = vunpack.c.l.b16 %v878
        %v963 = vpack.c.b16 %v962, %v961
        %v966 = vsel %vm939, %v958, 0
        %968 = vmatpush.bf16.msra.mxu0 0
        %969 = vmatpush.bf16.msra.mxu0 0
        %970 = vmatpush.bf16.msra.mxu0 0
        %971 = vmatpush.bf16.msra.mxu0 0
        %972 = vmatpush.bf16.msra.mxu0 0
        %973 = vmatpush.bf16.msra.mxu0 0
        %974 = vmatpush.bf16.msra.mxu0 0
        %975 = vmatpush.bf16.msra.mxu0 %v963
        %976 = vmatmul.bf16.gmra.mxu0 %v966
        %v977 = vpop.f32.mrf.mxu0
        %v978 = vadd.f32 0.0, %v977
        %v979 = vpop.f32.mrf.mxu0
        %v980 = vadd.f32 0.0, %v979
        %981 = vdwg.mxu0
        %v982 = vrcp.pop %v954
        %v983 = vrcp.pop %v957
        %v984 = vmul.f32 %v978, %v982
        %v985 = vmul.f32 %v980, %v983
        %v986 = vpack.c.bf16 %v985, %v984
        %987 = vrot.lane.b32.xlu0 %v908, 96
        %v988 = vpop.permute.xlu0 %987
        %989 = vrot.lane.b32.xlu0 %v913, 96
        %v990 = vpop.permute.xlu0 %989
        %v992 = vsel %vm914, %v988, 0
        %v995 = vsel %vm914, %v990, 0
        %997 = vmatpush.bf16.xpose.msra.mxu0 0
        %998 = vmatpush.bf16.xpose.msra.mxu0 0
        %999 = vmatpush.bf16.xpose.msra.mxu0 0
        %1000 = vmatpush.bf16.xpose.msra.mxu0 0
        %1001 = vmatpush.bf16.xpose.msra.mxu0 0
        %1002 = vmatpush.bf16.xpose.msra.mxu0 0
        %1003 = vmatpush.bf16.xpose.msra.mxu0 0
        %1004 = vmatpush.bf16.xpose.msra.mxu0 %v995
        %1005 = vmatmul.bf16.gmra.mxu0 %v992
        %v1006 = vpop.f32.mrf.mxu0
        %v1007 = vadd.f32 0.0, %v1006
        %v1008 = vpop.f32.mrf.mxu0
        %v1009 = vadd.f32 0.0, %v1008
        %1010 = vdwg.mxu0
        %v1011 = vmul.f32 %v1007, 0.17677669
        %v1012 = vmul.f32 %v1009, 0.17677669
        %v1013 = vadd.f32 %v1011, %v886
        %v1014 = vadd.f32 %v1012, %v887
        %v1015 = vsel %vm939, %v1013, -inf
        %1016 = vmax.xlane.f32.xlu0 %v1015
        %v1017 = vpop.xlane.xlu0 %1016
        %v1018 = vsel %vm939, %v1014, -inf
        %1019 = vmax.xlane.f32.xlu0 %v1018
        %v1020 = vpop.xlane.xlu0 %1019
        %v1021 = vsub.f32 %v1013, %v1017
        %v1022 = vsub.f32 %v1014, %v1020
        %v1023 = vmul.f32 %v1021, 1.442695
        %v1024 = vpow.pop %v1023
        %v1025 = vmul.f32 %v1022, 1.442695
        %v1026 = vpow.pop %v1025
        %v1027 = vsel %vm939, %v1024, 0.0
        %1028 = vadd.xlane.f32.xlu0 %v1027
        %v1029 = vpop.xlane.xlu0 %1028
        %v1030 = vsel %vm939, %v1026, 0.0
        %1031 = vadd.xlane.f32.xlu0 %v1030
        %v1032 = vpop.xlane.xlu0 %1031
        %v1033 = vpack.c.bf16 %v1026, %v1024
        %1034 = vrot.lane.b32.xlu0 %v963, 96
        %v1035 = vpop.permute.xlu0 %1034
        %v1038 = vsel %vm939, %v1033, 0
        %1040 = vmatpush.bf16.msra.mxu0 0
        %1041 = vmatpush.bf16.msra.mxu0 0
        %1042 = vmatpush.bf16.msra.mxu0 0
        %1043 = vmatpush.bf16.msra.mxu0 0
        %1044 = vmatpush.bf16.msra.mxu0 0
        %1045 = vmatpush.bf16.msra.mxu0 0
        %1046 = vmatpush.bf16.msra.mxu0 0
        %1047 = vmatpush.bf16.msra.mxu0 %v1035
        %1048 = vmatmul.bf16.gmra.mxu0 %v1038
        %v1049 = vpop.f32.mrf.mxu0
        %v1050 = vadd.f32 0.0, %v1049
        %v1051 = vpop.f32.mrf.mxu0
        %v1052 = vadd.f32 0.0, %v1051
        %1053 = vdwg.mxu0
        %v1054 = vrcp.pop %v1029
        %v1055 = vrcp.pop %v1032
        %v1056 = vmul.f32 %v1050, %v1054
        %v1057 = vmul.f32 %v1052, %v1055
        %v1058 = vpack.c.bf16 %v1057, %v1056
        %v1063 = vunpack.c.l.b16 %v892
        %v1064 = vunpack.c.l.b16 %v893
        %v1065 = vunpack.c.l.b16 %v894
        %v1066 = vunpack.c.l.b16 %v895
        %v1067 = vpack.c.b16 %v1064, %v1063
        %v1068 = vpack.c.b16 %v1066, %v1065
        %v1072 = vsel %vm914, %v1058, 0
        %1074 = vmatpush.bf16.msra.mxu0 0
        %1075 = vmatpush.bf16.msra.mxu0 0
        %1076 = vmatpush.bf16.msra.mxu0 0
        %1077 = vmatpush.bf16.msra.mxu0 0
        %1078 = vmatpush.bf16.msra.mxu0 0
        %1079 = vmatpush.bf16.msra.mxu0 0
        %1080 = vmatpush.bf16.msra.mxu0 %v1068
        %1081 = vmatpush.bf16.msra.mxu0 %v1067
        %1082 = vmatmul.bf16.gmra.mxu0 %v1072
        %v1083 = vpop.f32.mrf.mxu0
        %v1084 = vadd.f32 0.0, %v1083
        %v1085 = vpop.f32.mrf.mxu0
        %v1086 = vadd.f32 0.0, %v1085
        %1087 = vdwg.mxu0
        %v1092 = vunpack.c.l.b16 %v888
        %v1093 = vunpack.c.l.b16 %v889
        %v1094 = vunpack.c.l.b16 %v890
        %v1095 = vunpack.c.l.b16 %v891
        %v1096 = vpack.c.b16 %v1093, %v1092
        %v1097 = vpack.c.b16 %v1095, %v1094
        %v1101 = vsel %vm914, %v986, 0
        %1103 = vmatpush.bf16.msra.mxu0 0
        %1104 = vmatpush.bf16.msra.mxu0 0
        %1105 = vmatpush.bf16.msra.mxu0 0
        %1106 = vmatpush.bf16.msra.mxu0 0
        %1107 = vmatpush.bf16.msra.mxu0 0
        %1108 = vmatpush.bf16.msra.mxu0 0
        %1109 = vmatpush.bf16.msra.mxu0 %v1097
        %1110 = vmatpush.bf16.msra.mxu0 %v1096
        %1111 = vmatmul.bf16.gmra.mxu0 %v1101
        %v1112 = vpop.f32.mrf.mxu0
        %v1113 = vadd.f32 %v1084, %v1112
        %v1114 = vpop.f32.mrf.mxu0
        %v1115 = vadd.f32 %v1086, %v1114
        %1116 = vdwg.mxu0
        %1117 = vrot.lane.b32.xlu0 %v908, 64
        %v1118 = vpop.permute.xlu0 %1117
        %1119 = vrot.lane.b32.xlu0 %v913, 64
        %v1120 = vpop.permute.xlu0 %1119
        %v1122 = vsel %vm914, %v1118, 0
        %v1125 = vsel %vm914, %v1120, 0
        %1127 = vmatpush.bf16.xpose.msra.mxu0 0
        %1128 = vmatpush.bf16.xpose.msra.mxu0 0
        %1129 = vmatpush.bf16.xpose.msra.mxu0 0
        %1130 = vmatpush.bf16.xpose.msra.mxu0 0
        %1131 = vmatpush.bf16.xpose.msra.mxu0 0
        %1132 = vmatpush.bf16.xpose.msra.mxu0 0
        %1133 = vmatpush.bf16.xpose.msra.mxu0 0
        %1134 = vmatpush.bf16.xpose.msra.mxu0 %v1125
        %1135 = vmatmul.bf16.gmra.mxu0 %v1122
        %v1136 = vpop.f32.mrf.mxu0
        %v1137 = vadd.f32 0.0, %v1136
        %v1138 = vpop.f32.mrf.mxu0
        %v1139 = vadd.f32 0.0, %v1138
        %1140 = vdwg.mxu0
        %v1141 = vmul.f32 %v1137, 0.17677669
        %v1142 = vmul.f32 %v1139, 0.17677669
        %v1143 = vadd.f32 %v1141, %v886
        %v1144 = vadd.f32 %v1142, %v887
        %v1145 = vsel %vm939, %v1143, -inf
        %1146 = vmax.xlane.f32.xlu0 %v1145
        %v1147 = vpop.xlane.xlu0 %1146
        %v1148 = vsel %vm939, %v1144, -inf
        %1149 = vmax.xlane.f32.xlu0 %v1148
        %v1150 = vpop.xlane.xlu0 %1149
        %v1151 = vsub.f32 %v1143, %v1147
        %v1152 = vsub.f32 %v1144, %v1150
        %v1153 = vmul.f32 %v1151, 1.442695
        %v1154 = vpow.pop %v1153
        %v1155 = vmul.f32 %v1152, 1.442695
        %v1156 = vpow.pop %v1155
        %v1157 = vsel %vm939, %v1154, 0.0
        %1158 = vadd.xlane.f32.xlu0 %v1157
        %v1159 = vpop.xlane.xlu0 %1158
        %v1160 = vsel %vm939, %v1156, 0.0
        %1161 = vadd.xlane.f32.xlu0 %v1160
        %v1162 = vpop.xlane.xlu0 %1161
        %v1163 = vpack.c.bf16 %v1156, %v1154
        %1164 = vrot.lane.b32.xlu0 %v963, 64
        %v1165 = vpop.permute.xlu0 %1164
        %v1168 = vsel %vm939, %v1163, 0
        %1170 = vmatpush.bf16.msra.mxu0 0
        %1171 = vmatpush.bf16.msra.mxu0 0
        %1172 = vmatpush.bf16.msra.mxu0 0
        %1173 = vmatpush.bf16.msra.mxu0 0
        %1174 = vmatpush.bf16.msra.mxu0 0
        %1175 = vmatpush.bf16.msra.mxu0 0
        %1176 = vmatpush.bf16.msra.mxu0 0
        %1177 = vmatpush.bf16.msra.mxu0 %v1165
        %1178 = vmatmul.bf16.gmra.mxu0 %v1168
        %v1179 = vpop.f32.mrf.mxu0
        %v1180 = vadd.f32 0.0, %v1179
        %v1181 = vpop.f32.mrf.mxu0
        %v1182 = vadd.f32 0.0, %v1181
        %1183 = vdwg.mxu0
        %v1184 = vrcp.pop %v1159
        %v1185 = vrcp.pop %v1162
        %v1186 = vmul.f32 %v1180, %v1184
        %v1187 = vmul.f32 %v1182, %v1185
        %v1188 = vpack.c.bf16 %v1187, %v1186
        %v1193 = vunpack.c.l.b16 %v896
        %v1194 = vunpack.c.l.b16 %v897
        %v1195 = vunpack.c.l.b16 %v898
        %v1196 = vunpack.c.l.b16 %v899
        %v1197 = vpack.c.b16 %v1194, %v1193
        %v1198 = vpack.c.b16 %v1196, %v1195
        %v1202 = vsel %vm914, %v1188, 0
        %1204 = vmatpush.bf16.msra.mxu0 0
        %1205 = vmatpush.bf16.msra.mxu0 0
        %1206 = vmatpush.bf16.msra.mxu0 0
        %1207 = vmatpush.bf16.msra.mxu0 0
        %1208 = vmatpush.bf16.msra.mxu0 0
        %1209 = vmatpush.bf16.msra.mxu0 0
        %1210 = vmatpush.bf16.msra.mxu0 %v1198
        %1211 = vmatpush.bf16.msra.mxu0 %v1197
        %1212 = vmatmul.bf16.gmra.mxu0 %v1202
        %v1213 = vpop.f32.mrf.mxu0
        %v1214 = vadd.f32 0.0, %v1213
        %v1215 = vpop.f32.mrf.mxu0
        %v1216 = vadd.f32 0.0, %v1215
        %1217 = vdwg.mxu0
        %v1218 = vadd.f32 %v1113, %v1214
        %v1219 = vadd.f32 %v1115, %v1216
        %1220 = vrot.lane.b32.xlu0 %v908, 32
        %v1221 = vpop.permute.xlu0 %1220
        %1222 = vrot.lane.b32.xlu0 %v913, 32
        %v1223 = vpop.permute.xlu0 %1222
        %v1225 = vsel %vm914, %v1221, 0
        %v1228 = vsel %vm914, %v1223, 0
        %1230 = vmatpush.bf16.xpose.msra.mxu0 0
        %1231 = vmatpush.bf16.xpose.msra.mxu0 0
        %1232 = vmatpush.bf16.xpose.msra.mxu0 0
        %1233 = vmatpush.bf16.xpose.msra.mxu0 0
        %1234 = vmatpush.bf16.xpose.msra.mxu0 0
        %1235 = vmatpush.bf16.xpose.msra.mxu0 0
        %1236 = vmatpush.bf16.xpose.msra.mxu0 0
        %1237 = vmatpush.bf16.xpose.msra.mxu0 %v1228
        %1238 = vmatmul.bf16.gmra.mxu0 %v1225
        %v1239 = vpop.f32.mrf.mxu0
        %v1240 = vadd.f32 0.0, %v1239
        %v1241 = vpop.f32.mrf.mxu0
        %v1242 = vadd.f32 0.0, %v1241
        %1243 = vdwg.mxu0
        %v1244 = vmul.f32 %v1240, 0.17677669
        %v1245 = vmul.f32 %v1242, 0.17677669
        %v1246 = vadd.f32 %v1244, %v886
        %v1247 = vadd.f32 %v1245, %v887
        %v1248 = vsel %vm939, %v1246, -inf
        %1249 = vmax.xlane.f32.xlu0 %v1248
        %v1250 = vpop.xlane.xlu0 %1249
        %v1251 = vsel %vm939, %v1247, -inf
        %1252 = vmax.xlane.f32.xlu0 %v1251
        %v1253 = vpop.xlane.xlu0 %1252
        %v1254 = vsub.f32 %v1246, %v1250
        %v1255 = vsub.f32 %v1247, %v1253
        %v1256 = vmul.f32 %v1254, 1.442695
        %v1257 = vpow.pop %v1256
        %v1258 = vmul.f32 %v1255, 1.442695
        %v1259 = vpow.pop %v1258
        %v1260 = vsel %vm939, %v1257, 0.0
        %1261 = vadd.xlane.f32.xlu0 %v1260
        %v1262 = vpop.xlane.xlu0 %1261
        %v1263 = vsel %vm939, %v1259, 0.0
        %1264 = vadd.xlane.f32.xlu0 %v1263
        %v1265 = vpop.xlane.xlu0 %1264
        %v1266 = vpack.c.bf16 %v1259, %v1257
        %1267 = vrot.lane.b32.xlu0 %v963, 32
        %v1268 = vpop.permute.xlu0 %1267
        %v1271 = vsel %vm939, %v1266, 0
        %1273 = vmatpush.bf16.msra.mxu0 0
        %1274 = vmatpush.bf16.msra.mxu0 0
        %1275 = vmatpush.bf16.msra.mxu0 0
        %1276 = vmatpush.bf16.msra.mxu0 0
        %1277 = vmatpush.bf16.msra.mxu0 0
        %1278 = vmatpush.bf16.msra.mxu0 0
        %1279 = vmatpush.bf16.msra.mxu0 0
        %1280 = vmatpush.bf16.msra.mxu0 %v1268
        %1281 = vmatmul.bf16.gmra.mxu0 %v1271
        %v1282 = vpop.f32.mrf.mxu0
        %v1283 = vadd.f32 0.0, %v1282
        %v1284 = vpop.f32.mrf.mxu0
        %v1285 = vadd.f32 0.0, %v1284
        %1286 = vdwg.mxu0
        %v1287 = vrcp.pop %v1262
        %v1288 = vrcp.pop %v1265
        %v1289 = vmul.f32 %v1283, %v1287
        %v1290 = vmul.f32 %v1285, %v1288
        %v1291 = vpack.c.bf16 %v1290, %v1289
        %v1296 = vunpack.c.l.b16 %v900
        %v1297 = vunpack.c.l.b16 %v901
        %v1298 = vunpack.c.l.b16 %v902
        %v1299 = vunpack.c.l.b16 %v903
        %v1300 = vpack.c.b16 %v1297, %v1296
        %v1301 = vpack.c.b16 %v1299, %v1298
        %v1305 = vsel %vm914, %v1291, 0
        %1307 = vmatpush.bf16.msra.mxu0 0
        %1308 = vmatpush.bf16.msra.mxu0 0
        %1309 = vmatpush.bf16.msra.mxu0 0
        %1310 = vmatpush.bf16.msra.mxu0 0
        %1311 = vmatpush.bf16.msra.mxu0 0
        %1312 = vmatpush.bf16.msra.mxu0 0
        %1313 = vmatpush.bf16.msra.mxu0 %v1301
        %1314 = vmatpush.bf16.msra.mxu0 %v1300
        %1315 = vmatmul.bf16.gmra.mxu0 %v1305
        %v1316 = vpop.f32.mrf.mxu0
        %v1317 = vadd.f32 0.0, %v1316
        %v1318 = vpop.f32.mrf.mxu0
        %v1319 = vadd.f32 0.0, %v1318
        %1320 = vdwg.mxu0
        %v1321 = vadd.f32 %v1218, %v1317
        %v1322 = vadd.f32 %v1219, %v1319
        %v1323 = vadd.f32 %v601, %v1321
        %v1324 = vadd.f32 %v602, %v1322
        %v1325 = vld [vmem:[#allocation11] sm:$0x1]
        %v1327 = vperm.slane %v1325, 0
        %v1329 = vadd.f32 %v1323, %v1327
        %v1330 = vadd.f32 %v1324, %v1327
        %v1331 = vld [vmem:[#allocation13] sm:$0x1]
        %v1332 = vld [vmem:[#allocation14] sm:$0x1]
        %1333 = vadd.xlane.f32.xlu0 %v1329
        %v1334 = vpop.xlane.xlu0 %1333
        %1335 = vadd.xlane.f32.xlu0 %v1330
        %v1336 = vpop.xlane.xlu0 %1335
        %v1337 = vmul.f32 %v1334, %v615
        %v1338 = vmul.f32 %v1336, %v615
        %v1339 = vsub.f32 %v1329, %v1337
        %v1340 = vsub.f32 %v1330, %v1338
        %v1341 = vmul.f32 %v1339, %v1339
        %v1342 = vmul.f32 %v1340, %v1340
        %1343 = vadd.xlane.f32.xlu0 %v1341
        %v1344 = vpop.xlane.xlu0 %1343
        %1345 = vadd.xlane.f32.xlu0 %v1342
        %v1346 = vpop.xlane.xlu0 %1345
        %v1347 = vmul.f32 %v1344, %v615
        %v1348 = vmul.f32 %v1346, %v615
        %v1349 = vadd.f32 %v1347, 1e-05
        %v1350 = vadd.f32 %v1348, 1e-05
        %v1351 = vrsqrt.pop %v1349
        %v1352 = vmul.f32 %v1351, %v1349
        %v1353 = vmul.f32 %v1352, %v1351
        %v1354 = vmul.f32 0.5, %v1353
        %v1355 = vsub.f32 1.5, %v1354
        %v1356 = vmul.f32 %v1351, %v1355
        %vm1357 = vweird.f32 %v1349
        %vm1358 = vweird.f32 %v1351
        %vm1359 = vmor %vm1357, %vm1358
        %v1360 = vsel %vm1359, %v1351, %v1356
        %v1361 = vrsqrt.pop %v1350
        %v1362 = vmul.f32 %v1361, %v1350
        %v1363 = vmul.f32 %v1362, %v1361
        %v1364 = vmul.f32 0.5, %v1363
        %v1365 = vsub.f32 1.5, %v1364
        %v1366 = vmul.f32 %v1361, %v1365
        %vm1367 = vweird.f32 %v1350
        %vm1368 = vweird.f32 %v1361
        %vm1369 = vmor %vm1367, %vm1368
        %v1370 = vsel %vm1369, %v1361, %v1366
        %v1371 = vmul.f32 %v1339, %v1360
        %v1372 = vmul.f32 %v1340, %v1370
        %v1374 = vperm.slane %v1331, 0
        %v1376 = vmul.f32 %v1371, %v1374
        %v1377 = vmul.f32 %v1372, %v1374
        %v1379 = vperm.slane %v1332, 0
        %v1381 = vadd.f32 %v1376, %v1379
        %v1382 = vadd.f32 %v1377, %v1379
        %v1383 = vpack.c.bf16 %v1382, %v1381
        %v1384 = vld [vmem:[#allocation16] sm:$0xff]
        %v1385 = vld [vmem:[#allocation16 + $0x8] sm:$0xff]
        %v1386 = vld [vmem:[#allocation16 + $0x10] sm:$0xff]
        %v1387 = vld [vmem:[#allocation16 + $0x18] sm:$0xff]
        %v1388 = vld [vmem:[#allocation16 + $0x20] sm:$0xff]
        %v1389 = vld [vmem:[#allocation16 + $0x28] sm:$0xff]
        %v1390 = vld [vmem:[#allocation16 + $0x30] sm:$0xff]
        %v1391 = vld [vmem:[#allocation16 + $0x38] sm:$0xff]
        %v1392 = vld [vmem:[#allocation16 + $0x40] sm:$0xff]
        %v1393 = vld [vmem:[#allocation16 + $0x48] sm:$0xff]
        %v1394 = vld [vmem:[#allocation16 + $0x50] sm:$0xff]
        %v1395 = vld [vmem:[#allocation16 + $0x58] sm:$0xff]
        %v1396 = vld [vmem:[#allocation16 + $0x60] sm:$0xff]
        %v1397 = vld [vmem:[#allocation16 + $0x68] sm:$0xff]
        %v1398 = vld [vmem:[#allocation16 + $0x70] sm:$0xff]
        %v1399 = vld [vmem:[#allocation16 + $0x78] sm:$0xff]
        %v1400 = vld [vmem:[#allocation16 + $0x80] sm:$0xff]
        %v1401 = vld [vmem:[#allocation16 + $0x88] sm:$0xff]
        %v1402 = vld [vmem:[#allocation16 + $0x90] sm:$0xff]
        %v1403 = vld [vmem:[#allocation16 + $0x98] sm:$0xff]
        %v1404 = vld [vmem:[#allocation16 + $0xa0] sm:$0xff]
        %v1405 = vld [vmem:[#allocation16 + $0xa8] sm:$0xff]
        %v1406 = vld [vmem:[#allocation16 + $0xb0] sm:$0xff]
        %v1407 = vld [vmem:[#allocation16 + $0xb8] sm:$0xff]
        %v1408 = vld [vmem:[#allocation16 + $0xc0] sm:$0xff]
        %v1409 = vld [vmem:[#allocation16 + $0xc8] sm:$0xff]
        %v1410 = vld [vmem:[#allocation16 + $0xd0] sm:$0xff]
        %v1411 = vld [vmem:[#allocation16 + $0xd8] sm:$0xff]
        %v1412 = vld [vmem:[#allocation16 + $0xe0] sm:$0xff]
        %v1413 = vld [vmem:[#allocation16 + $0xe8] sm:$0xff]
        %v1414 = vld [vmem:[#allocation16 + $0xf0] sm:$0xff]
        %v1415 = vld [vmem:[#allocation16 + $0xf8] sm:$0xff]
        %v1416 = vld [vmem:[%s10] sm:$0xf]
        %v1418 = vperm.slane %v1416, 0
        %v1419 = vperm.slane %v1416, 1
        %v1420 = vperm.slane %v1416, 2
        %v1421 = vperm.slane %v1416, 3
        %v1458 = vunpack.c.l.b16 %v1384
        %v1459 = vunpack.c.h.b16 %v1384
        %v1460 = vunpack.c.l.b16 %v1385
        %v1461 = vunpack.c.h.b16 %v1385
        %v1462 = vunpack.c.l.b16 %v1386
        %v1463 = vunpack.c.h.b16 %v1386
        %v1464 = vunpack.c.l.b16 %v1387
        %v1465 = vunpack.c.h.b16 %v1387
        %v1466 = vunpack.c.l.b16 %v1388
        %v1467 = vunpack.c.h.b16 %v1388
        %v1468 = vunpack.c.l.b16 %v1389
        %v1469 = vunpack.c.h.b16 %v1389
        %v1470 = vunpack.c.l.b16 %v1390
        %v1471 = vunpack.c.h.b16 %v1390
        %v1472 = vunpack.c.l.b16 %v1391
        %v1473 = vunpack.c.h.b16 %v1391
        %v1474 = vunpack.c.l.b16 %v1392
        %v1475 = vunpack.c.h.b16 %v1392
        %v1476 = vunpack.c.l.b16 %v1393
        %v1477 = vunpack.c.h.b16 %v1393
        %v1478 = vunpack.c.l.b16 %v1394
        %v1479 = vunpack.c.h.b16 %v1394
        %v1480 = vunpack.c.l.b16 %v1395
        %v1481 = vunpack.c.h.b16 %v1395
        %v1482 = vunpack.c.l.b16 %v1396
        %v1483 = vunpack.c.h.b16 %v1396
        %v1484 = vunpack.c.l.b16 %v1397
        %v1485 = vunpack.c.h.b16 %v1397
        %v1486 = vunpack.c.l.b16 %v1398
        %v1487 = vunpack.c.h.b16 %v1398
        %v1488 = vunpack.c.l.b16 %v1399
        %v1489 = vunpack.c.h.b16 %v1399
        %v1490 = vunpack.c.l.b16 %v1400
        %v1491 = vunpack.c.h.b16 %v1400
        %v1492 = vunpack.c.l.b16 %v1401
        %v1493 = vunpack.c.h.b16 %v1401
        %v1494 = vunpack.c.l.b16 %v1402
        %v1495 = vunpack.c.h.b16 %v1402
        %v1496 = vunpack.c.l.b16 %v1403
        %v1497 = vunpack.c.h.b16 %v1403
        %v1498 = vunpack.c.l.b16 %v1404
        %v1499 = vunpack.c.h.b16 %v1404
        %v1500 = vunpack.c.l.b16 %v1405
        %v1501 = vunpack.c.h.b16 %v1405
        %v1502 = vunpack.c.l.b16 %v1406
        %v1503 = vunpack.c.h.b16 %v1406
        %v1504 = vunpack.c.l.b16 %v1407
        %v1505 = vunpack.c.h.b16 %v1407
        %v1506 = vunpack.c.l.b16 %v1408
        %v1507 = vunpack.c.h.b16 %v1408
        %v1508 = vunpack.c.l.b16 %v1409
        %v1509 = vunpack.c.h.b16 %v1409
        %v1510 = vunpack.c.l.b16 %v1410
        %v1511 = vunpack.c.h.b16 %v1410
        %v1512 = vunpack.c.l.b16 %v1411
        %v1513 = vunpack.c.h.b16 %v1411
        %v1514 = vunpack.c.l.b16 %v1412
        %v1515 = vunpack.c.h.b16 %v1412
        %v1516 = vunpack.c.l.b16 %v1413
        %v1517 = vunpack.c.h.b16 %v1413
        %v1518 = vunpack.c.l.b16 %v1414
        %v1519 = vunpack.c.h.b16 %v1414
        %v1520 = vunpack.c.l.b16 %v1415
        %v1521 = vunpack.c.h.b16 %v1415
        %v1522 = vpack.c.b16 %v1462, %v1458
        %v1523 = vpack.c.b16 %v1463, %v1459
        %v1524 = vpack.c.b16 %v1464, %v1460
        %v1525 = vpack.c.b16 %v1465, %v1461
        %v1526 = vpack.c.b16 %v1470, %v1466
        %v1527 = vpack.c.b16 %v1471, %v1467
        %v1528 = vpack.c.b16 %v1472, %v1468
        %v1529 = vpack.c.b16 %v1473, %v1469
        %v1530 = vpack.c.b16 %v1478, %v1474
        %v1531 = vpack.c.b16 %v1479, %v1475
        %v1532 = vpack.c.b16 %v1480, %v1476
        %v1533 = vpack.c.b16 %v1481, %v1477
        %v1534 = vpack.c.b16 %v1486, %v1482
        %v1535 = vpack.c.b16 %v1487, %v1483
        %v1536 = vpack.c.b16 %v1488, %v1484
        %v1537 = vpack.c.b16 %v1489, %v1485
        %v1538 = vpack.c.b16 %v1494, %v1490
        %v1539 = vpack.c.b16 %v1495, %v1491
        %v1540 = vpack.c.b16 %v1496, %v1492
        %v1541 = vpack.c.b16 %v1497, %v1493
        %v1542 = vpack.c.b16 %v1502, %v1498
        %v1543 = vpack.c.b16 %v1503, %v1499
        %v1544 = vpack.c.b16 %v1504, %v1500
        %v1545 = vpack.c.b16 %v1505, %v1501
        %v1546 = vpack.c.b16 %v1510, %v1506
        %v1547 = vpack.c.b16 %v1511, %v1507
        %v1548 = vpack.c.b16 %v1512, %v1508
        %v1549 = vpack.c.b16 %v1513, %v1509
        %v1550 = vpack.c.b16 %v1518, %v1514
        %v1551 = vpack.c.b16 %v1519, %v1515
        %v1552 = vpack.c.b16 %v1520, %v1516
        %v1553 = vpack.c.b16 %v1521, %v1517
        %1586 = vmatpush.bf16.msra.mxu0 %v1550
        %1587 = vmatpush.bf16.msra.mxu0 %v1546
        %1588 = vmatpush.bf16.msra.mxu0 %v1542
        %1589 = vmatpush.bf16.msra.mxu0 %v1538
        %1590 = vmatpush.bf16.msra.mxu0 %v1534
        %1591 = vmatpush.bf16.msra.mxu0 %v1530
        %1592 = vmatpush.bf16.msra.mxu0 %v1526
        %1593 = vmatpush.bf16.msra.mxu0 %v1522
        %1594 = vmatmul.bf16.gmra.mxu0 %v1383
        %v1595 = vpop.f32.mrf.mxu0
        %v1596 = vadd.f32 %v1418, %v1595
        %v1597 = vpop.f32.mrf.mxu0
        %v1598 = vadd.f32 %v1418, %v1597
        %1599 = vdwg.mxu0
        %1600 = vmatpush.bf16.msra.mxu0 %v1551
        %1601 = vmatpush.bf16.msra.mxu0 %v1547
        %1602 = vmatpush.bf16.msra.mxu0 %v1543
        %1603 = vmatpush.bf16.msra.mxu0 %v1539
        %1604 = vmatpush.bf16.msra.mxu0 %v1535
        %1605 = vmatpush.bf16.msra.mxu0 %v1531
        %1606 = vmatpush.bf16.msra.mxu0 %v1527
        %1607 = vmatpush.bf16.msra.mxu0 %v1523
        %1608 = vmatmul.bf16.gmra.mxu0 %v1383
        %v1609 = vpop.f32.mrf.mxu0
        %v1610 = vadd.f32 %v1419, %v1609
        %v1611 = vpop.f32.mrf.mxu0
        %v1612 = vadd.f32 %v1419, %v1611
        %1613 = vdwg.mxu0
        %1614 = vmatpush.bf16.msra.mxu0 %v1552
        %1615 = vmatpush.bf16.msra.mxu0 %v1548
        %1616 = vmatpush.bf16.msra.mxu0 %v1544
        %1617 = vmatpush.bf16.msra.mxu0 %v1540
        %1618 = vmatpush.bf16.msra.mxu0 %v1536
        %1619 = vmatpush.bf16.msra.mxu0 %v1532
        %1620 = vmatpush.bf16.msra.mxu0 %v1528
        %1621 = vmatpush.bf16.msra.mxu0 %v1524
        %1622 = vmatmul.bf16.gmra.mxu0 %v1383
        %v1623 = vpop.f32.mrf.mxu0
        %v1624 = vadd.f32 %v1420, %v1623
        %v1625 = vpop.f32.mrf.mxu0
        %v1626 = vadd.f32 %v1420, %v1625
        %1627 = vdwg.mxu0
        %1628 = vmatpush.bf16.msra.mxu0 %v1553
        %1629 = vmatpush.bf16.msra.mxu0 %v1549
        %1630 = vmatpush.bf16.msra.mxu0 %v1545
        %1631 = vmatpush.bf16.msra.mxu0 %v1541
        %1632 = vmatpush.bf16.msra.mxu0 %v1537
        %1633 = vmatpush.bf16.msra.mxu0 %v1533
        %1634 = vmatpush.bf16.msra.mxu0 %v1529
        %1635 = vmatpush.bf16.msra.mxu0 %v1525
        %1636 = vmatmul.bf16.gmra.mxu0 %v1383
        %v1637 = vpop.f32.mrf.mxu0
        %v1638 = vadd.f32 %v1421, %v1637
        %v1639 = vpop.f32.mrf.mxu0
        %v1640 = vadd.f32 %v1421, %v1639
        %1641 = vdwg.mxu0
        %v1642 = vmul.f32 %v1596, 0.5
        %v1643 = vmul.f32 %v1610, 0.5
        %v1644 = vmul.f32 %v1624, 0.5
        %v1645 = vmul.f32 %v1638, 0.5
        %v1646 = vmul.f32 %v1598, 0.5
        %v1647 = vmul.f32 %v1612, 0.5
        %v1648 = vmul.f32 %v1626, 0.5
        %v1649 = vmul.f32 %v1640, 0.5
        %v1650 = vmul.f32 %v1596, 0.044715
        %v1651 = vmul.f32 %v1610, 0.044715
        %v1652 = vmul.f32 %v1624, 0.044715
        %v1653 = vmul.f32 %v1638, 0.044715
        %v1654 = vmul.f32 %v1598, 0.044715
        %v1655 = vmul.f32 %v1612, 0.044715
        %v1656 = vmul.f32 %v1626, 0.044715
        %v1657 = vmul.f32 %v1640, 0.044715
        %v1658 = vmul.f32 %v1650, %v1596
        %v1659 = vmul.f32 %v1651, %v1610
        %v1660 = vmul.f32 %v1652, %v1624
        %v1661 = vmul.f32 %v1653, %v1638
        %v1662 = vmul.f32 %v1654, %v1598
        %v1663 = vmul.f32 %v1655, %v1612
        %v1664 = vmul.f32 %v1656, %v1626
        %v1665 = vmul.f32 %v1657, %v1640
        %v1666 = vmul.f32 %v1658, %v1596
        %v1667 = vmul.f32 %v1659, %v1610
        %v1668 = vmul.f32 %v1660, %v1624
        %v1669 = vmul.f32 %v1661, %v1638
        %v1670 = vmul.f32 %v1662, %v1598
        %v1671 = vmul.f32 %v1663, %v1612
        %v1672 = vmul.f32 %v1664, %v1626
        %v1673 = vmul.f32 %v1665, %v1640
        %v1674 = vadd.f32 %v1596, %v1666
        %v1675 = vadd.f32 %v1610, %v1667
        %v1676 = vadd.f32 %v1624, %v1668
        %v1677 = vadd.f32 %v1638, %v1669
        %v1678 = vadd.f32 %v1598, %v1670
        %v1679 = vadd.f32 %v1612, %v1671
        %v1680 = vadd.f32 %v1626, %v1672
        %v1681 = vadd.f32 %v1640, %v1673
        %v1682 = vmul.f32 %v1674, 0.7978846
        %v1683 = vmul.f32 %v1675, 0.7978846
        %v1684 = vmul.f32 %v1676, 0.7978846
        %v1685 = vmul.f32 %v1677, 0.7978846
        %v1686 = vmul.f32 %v1678, 0.7978846
        %v1687 = vmul.f32 %v1679, 0.7978846
        %v1688 = vmul.f32 %v1680, 0.7978846
        %v1689 = vmul.f32 %v1681, 0.7978846
        %v1690 = vtanh.pop %v1682
        %v1691 = vtanh.pop %v1683
        %v1692 = vtanh.pop %v1684
        %v1693 = vtanh.pop %v1685
        %v1694 = vtanh.pop %v1686
        %v1695 = vtanh.pop %v1687
        %v1696 = vtanh.pop %v1688
        %v1697 = vtanh.pop %v1689
        %v1698 = vadd.f32 %v1690, 1.0
        %v1699 = vadd.f32 %v1691, 1.0
        %v1700 = vadd.f32 %v1692, 1.0
        %v1701 = vadd.f32 %v1693, 1.0
        %v1702 = vadd.f32 %v1694, 1.0
        %v1703 = vadd.f32 %v1695, 1.0
        %v1704 = vadd.f32 %v1696, 1.0
        %v1705 = vadd.f32 %v1697, 1.0
        %v1706 = vmul.f32 %v1642, %v1698
        %v1707 = vmul.f32 %v1643, %v1699
        %v1708 = vmul.f32 %v1644, %v1700
        %v1709 = vmul.f32 %v1645, %v1701
        %v1710 = vmul.f32 %v1646, %v1702
        %v1711 = vmul.f32 %v1647, %v1703
        %v1712 = vmul.f32 %v1648, %v1704
        %v1713 = vmul.f32 %v1649, %v1705
        %v1714 = vpack.c.bf16 %v1710, %v1706
        %v1715 = vpack.c.bf16 %v1711, %v1707
        %v1716 = vpack.c.bf16 %v1712, %v1708
        %v1717 = vpack.c.bf16 %v1713, %v1709
        %v1718 = vld [vmem:[#allocation17] sm:$0xf]
        %v1719 = vld [vmem:[#allocation17 + $0x4] sm:$0xf]
        %v1720 = vld [vmem:[#allocation17 + $0x8] sm:$0xf]
        %v1721 = vld [vmem:[#allocation17 + $0xc] sm:$0xf]
        %v1722 = vld [vmem:[#allocation17 + $0x10] sm:$0xf]
        %v1723 = vld [vmem:[#allocation17 + $0x14] sm:$0xf]
        %v1724 = vld [vmem:[#allocation17 + $0x18] sm:$0xf]
        %v1725 = vld [vmem:[#allocation17 + $0x1c] sm:$0xf]
        %v1726 = vld [vmem:[#allocation17 + $0x20] sm:$0xf]
        %v1727 = vld [vmem:[#allocation17 + $0x24] sm:$0xf]
        %v1728 = vld [vmem:[#allocation17 + $0x28] sm:$0xf]
        %v1729 = vld [vmem:[#allocation17 + $0x2c] sm:$0xf]
        %v1730 = vld [vmem:[#allocation17 + $0x30] sm:$0xf]
        %v1731 = vld [vmem:[#allocation17 + $0x34] sm:$0xf]
        %v1732 = vld [vmem:[#allocation17 + $0x38] sm:$0xf]
        %v1733 = vld [vmem:[#allocation17 + $0x3c] sm:$0xf]
        %v1734 = vld [vmem:[#allocation17 + $0x40] sm:$0xf]
        %v1735 = vld [vmem:[#allocation17 + $0x44] sm:$0xf]
        %v1736 = vld [vmem:[#allocation17 + $0x48] sm:$0xf]
        %v1737 = vld [vmem:[#allocation17 + $0x4c] sm:$0xf]
        %v1738 = vld [vmem:[#allocation17 + $0x50] sm:$0xf]
        %v1739 = vld [vmem:[#allocation17 + $0x54] sm:$0xf]
        %v1740 = vld [vmem:[#allocation17 + $0x58] sm:$0xf]
        %v1741 = vld [vmem:[#allocation17 + $0x5c] sm:$0xf]
        %v1742 = vld [vmem:[#allocation17 + $0x60] sm:$0xf]
        %v1743 = vld [vmem:[#allocation17 + $0x64] sm:$0xf]
        %v1744 = vld [vmem:[#allocation17 + $0x68] sm:$0xf]
        %v1745 = vld [vmem:[#allocation17 + $0x6c] sm:$0xf]
        %v1746 = vld [vmem:[#allocation17 + $0x70] sm:$0xf]
        %v1747 = vld [vmem:[#allocation17 + $0x74] sm:$0xf]
        %v1748 = vld [vmem:[#allocation17 + $0x78] sm:$0xf]
        %v1749 = vld [vmem:[#allocation17 + $0x7c] sm:$0xf]
        %v1750 = vld [vmem:[#allocation17 + $0x80] sm:$0xf]
        %v1751 = vld [vmem:[#allocation17 + $0x84] sm:$0xf]
        %v1752 = vld [vmem:[#allocation17 + $0x88] sm:$0xf]
        %v1753 = vld [vmem:[#allocation17 + $0x8c] sm:$0xf]
        %v1754 = vld [vmem:[#allocation17 + $0x90] sm:$0xf]
        %v1755 = vld [vmem:[#allocation17 + $0x94] sm:$0xf]
        %v1756 = vld [vmem:[#allocation17 + $0x98] sm:$0xf]
        %v1757 = vld [vmem:[#allocation17 + $0x9c] sm:$0xf]
        %v1758 = vld [vmem:[#allocation17 + $0xa0] sm:$0xf]
        %v1759 = vld [vmem:[#allocation17 + $0xa4] sm:$0xf]
        %v1760 = vld [vmem:[#allocation17 + $0xa8] sm:$0xf]
        %v1761 = vld [vmem:[#allocation17 + $0xac] sm:$0xf]
        %v1762 = vld [vmem:[#allocation17 + $0xb0] sm:$0xf]
        %v1763 = vld [vmem:[#allocation17 + $0xb4] sm:$0xf]
        %v1764 = vld [vmem:[#allocation17 + $0xb8] sm:$0xf]
        %v1765 = vld [vmem:[#allocation17 + $0xbc] sm:$0xf]
        %v1766 = vld [vmem:[#allocation17 + $0xc0] sm:$0xf]
        %v1767 = vld [vmem:[#allocation17 + $0xc4] sm:$0xf]
        %v1768 = vld [vmem:[#allocation17 + $0xc8] sm:$0xf]
        %v1769 = vld [vmem:[#allocation17 + $0xcc] sm:$0xf]
        %v1770 = vld [vmem:[#allocation17 + $0xd0] sm:$0xf]
        %v1771 = vld [vmem:[#allocation17 + $0xd4] sm:$0xf]
        %v1772 = vld [vmem:[#allocation17 + $0xd8] sm:$0xf]
        %v1773 = vld [vmem:[#allocation17 + $0xdc] sm:$0xf]
        %v1774 = vld [vmem:[#allocation17 + $0xe0] sm:$0xf]
        %v1775 = vld [vmem:[#allocation17 + $0xe4] sm:$0xf]
        %v1776 = vld [vmem:[#allocation17 + $0xe8] sm:$0xf]
        %v1777 = vld [vmem:[#allocation17 + $0xec] sm:$0xf]
        %v1778 = vld [vmem:[#allocation17 + $0xf0] sm:$0xf]
        %v1779 = vld [vmem:[#allocation17 + $0xf4] sm:$0xf]
        %v1780 = vld [vmem:[#allocation17 + $0xf8] sm:$0xf]
        %v1781 = vld [vmem:[#allocation17 + $0xfc] sm:$0xf]
        %v1782 = vld [vmem:[%s12] sm:$0x1]
        %v1784 = vperm.slane %v1782, 0
        %v1850 = vunpack.c.l.b16 %v1718
        %v1851 = vunpack.c.l.b16 %v1719
        %v1852 = vunpack.c.l.b16 %v1720
        %v1853 = vunpack.c.l.b16 %v1721
        %v1854 = vunpack.c.l.b16 %v1722
        %v1855 = vunpack.c.l.b16 %v1723
        %v1856 = vunpack.c.l.b16 %v1724
        %v1857 = vunpack.c.l.b16 %v1725
        %v1858 = vunpack.c.l.b16 %v1726
        %v1859 = vunpack.c.l.b16 %v1727
        %v1860 = vunpack.c.l.b16 %v1728
        %v1861 = vunpack.c.l.b16 %v1729
        %v1862 = vunpack.c.l.b16 %v1730
        %v1863 = vunpack.c.l.b16 %v1731
        %v1864 = vunpack.c.l.b16 %v1732
        %v1865 = vunpack.c.l.b16 %v1733
        %v1866 = vunpack.c.l.b16 %v1734
        %v1867 = vunpack.c.l.b16 %v1735
        %v1868 = vunpack.c.l.b16 %v1736
        %v1869 = vunpack.c.l.b16 %v1737
        %v1870 = vunpack.c.l.b16 %v1738
        %v1871 = vunpack.c.l.b16 %v1739
        %v1872 = vunpack.c.l.b16 %v1740
        %v1873 = vunpack.c.l.b16 %v1741
        %v1874 = vunpack.c.l.b16 %v1742
        %v1875 = vunpack.c.l.b16 %v1743
        %v1876 = vunpack.c.l.b16 %v1744
        %v1877 = vunpack.c.l.b16 %v1745
        %v1878 = vunpack.c.l.b16 %v1746
        %v1879 = vunpack.c.l.b16 %v1747
        %v1880 = vunpack.c.l.b16 %v1748
        %v1881 = vunpack.c.l.b16 %v1749
        %v1882 = vunpack.c.l.b16 %v1750
        %v1883 = vunpack.c.l.b16 %v1751
        %v1884 = vunpack.c.l.b16 %v1752
        %v1885 = vunpack.c.l.b16 %v1753
        %v1886 = vunpack.c.l.b16 %v1754
        %v1887 = vunpack.c.l.b16 %v1755
        %v1888 = vunpack.c.l.b16 %v1756
        %v1889 = vunpack.c.l.b16 %v1757
        %v1890 = vunpack.c.l.b16 %v1758
        %v1891 = vunpack.c.l.b16 %v1759
        %v1892 = vunpack.c.l.b16 %v1760
        %v1893 = vunpack.c.l.b16 %v1761
        %v1894 = vunpack.c.l.b16 %v1762
        %v1895 = vunpack.c.l.b16 %v1763
        %v1896 = vunpack.c.l.b16 %v1764
        %v1897 = vunpack.c.l.b16 %v1765
        %v1898 = vunpack.c.l.b16 %v1766
        %v1899 = vunpack.c.l.b16 %v1767
        %v1900 = vunpack.c.l.b16 %v1768
        %v1901 = vunpack.c.l.b16 %v1769
        %v1902 = vunpack.c.l.b16 %v1770
        %v1903 = vunpack.c.l.b16 %v1771
        %v1904 = vunpack.c.l.b16 %v1772
        %v1905 = vunpack.c.l.b16 %v1773
        %v1906 = vunpack.c.l.b16 %v1774
        %v1907 = vunpack.c.l.b16 %v1775
        %v1908 = vunpack.c.l.b16 %v1776
        %v1909 = vunpack.c.l.b16 %v1777
        %v1910 = vunpack.c.l.b16 %v1778
        %v1911 = vunpack.c.l.b16 %v1779
        %v1912 = vunpack.c.l.b16 %v1780
        %v1913 = vunpack.c.l.b16 %v1781
        %v1914 = vpack.c.b16 %v1851, %v1850
        %v1915 = vpack.c.b16 %v1853, %v1852
        %v1916 = vpack.c.b16 %v1855, %v1854
        %v1917 = vpack.c.b16 %v1857, %v1856
        %v1918 = vpack.c.b16 %v1859, %v1858
        %v1919 = vpack.c.b16 %v1861, %v1860
        %v1920 = vpack.c.b16 %v1863, %v1862
        %v1921 = vpack.c.b16 %v1865, %v1864
        %v1922 = vpack.c.b16 %v1867, %v1866
        %v1923 = vpack.c.b16 %v1869, %v1868
        %v1924 = vpack.c.b16 %v1871, %v1870
        %v1925 = vpack.c.b16 %v1873, %v1872
        %v1926 = vpack.c.b16 %v1875, %v1874
        %v1927 = vpack.c.b16 %v1877, %v1876
        %v1928 = vpack.c.b16 %v1879, %v1878
        %v1929 = vpack.c.b16 %v1881, %v1880
        %v1930 = vpack.c.b16 %v1883, %v1882
        %v1931 = vpack.c.b16 %v1885, %v1884
        %v1932 = vpack.c.b16 %v1887, %v1886
        %v1933 = vpack.c.b16 %v1889, %v1888
        %v1934 = vpack.c.b16 %v1891, %v1890
        %v1935 = vpack.c.b16 %v1893, %v1892
        %v1936 = vpack.c.b16 %v1895, %v1894
        %v1937 = vpack.c.b16 %v1897, %v1896
        %v1938 = vpack.c.b16 %v1899, %v1898
        %v1939 = vpack.c.b16 %v1901, %v1900
        %v1940 = vpack.c.b16 %v1903, %v1902
        %v1941 = vpack.c.b16 %v1905, %v1904
        %v1942 = vpack.c.b16 %v1907, %v1906
        %v1943 = vpack.c.b16 %v1909, %v1908
        %v1944 = vpack.c.b16 %v1911, %v1910
        %v1945 = vpack.c.b16 %v1913, %v1912
        %1978 = vmatpush.bf16.msra.mxu0 %v1921
        %1979 = vmatpush.bf16.msra.mxu0 %v1920
        %1980 = vmatpush.bf16.msra.mxu0 %v1919
        %1981 = vmatpush.bf16.msra.mxu0 %v1918
        %1982 = vmatpush.bf16.msra.mxu0 %v1917
        %1983 = vmatpush.bf16.msra.mxu0 %v1916
        %1984 = vmatpush.bf16.msra.mxu0 %v1915
        %1985 = vmatpush.bf16.msra.mxu0 %v1914
        %1986 = vmatmul.bf16.gmra.mxu0 %v1714
        %v1987 = vpop.f32.mrf.mxu0
        %v1988 = vadd.f32 %v1784, %v1987
        %v1989 = vpop.f32.mrf.mxu0
        %v1990 = vadd.f32 %v1784, %v1989
        %1991 = vdwg.mxu0
        %1992 = vmatpush.bf16.msra.mxu0 %v1929
        %1993 = vmatpush.bf16.msra.mxu0 %v1928
        %1994 = vmatpush.bf16.msra.mxu0 %v1927
        %1995 = vmatpush.bf16.msra.mxu0 %v1926
        %1996 = vmatpush.bf16.msra.mxu0 %v1925
        %1997 = vmatpush.bf16.msra.mxu0 %v1924
        %1998 = vmatpush.bf16.msra.mxu0 %v1923
        %1999 = vmatpush.bf16.msra.mxu0 %v1922
        %2000 = vmatmul.bf16.gmra.mxu0 %v1715
        %v2001 = vpop.f32.mrf.mxu0
        %v2002 = vadd.f32 %v1988, %v2001
        %v2003 = vpop.f32.mrf.mxu0
        %v2004 = vadd.f32 %v1990, %v2003
        %2005 = vdwg.mxu0
        %2006 = vmatpush.bf16.msra.mxu0 %v1937
        %2007 = vmatpush.bf16.msra.mxu0 %v1936
        %2008 = vmatpush.bf16.msra.mxu0 %v1935
        %2009 = vmatpush.bf16.msra.mxu0 %v1934
        %2010 = vmatpush.bf16.msra.mxu0 %v1933
        %2011 = vmatpush.bf16.msra.mxu0 %v1932
        %2012 = vmatpush.bf16.msra.mxu0 %v1931
        %2013 = vmatpush.bf16.msra.mxu0 %v1930
        %2014 = vmatmul.bf16.gmra.mxu0 %v1716
        %v2015 = vpop.f32.mrf.mxu0
        %v2016 = vadd.f32 %v2002, %v2015
        %v2017 = vpop.f32.mrf.mxu0
        %v2018 = vadd.f32 %v2004, %v2017
        %2019 = vdwg.mxu0
        %2020 = vmatpush.bf16.msra.mxu0 %v1945
        %2021 = vmatpush.bf16.msra.mxu0 %v1944
        %2022 = vmatpush.bf16.msra.mxu0 %v1943
        %2023 = vmatpush.bf16.msra.mxu0 %v1942
        %2024 = vmatpush.bf16.msra.mxu0 %v1941
        %2025 = vmatpush.bf16.msra.mxu0 %v1940
        %2026 = vmatpush.bf16.msra.mxu0 %v1939
        %2027 = vmatpush.bf16.msra.mxu0 %v1938
        %2028 = vmatmul.bf16.gmra.mxu0 %v1717
        %v2029 = vpop.f32.mrf.mxu0
        %v2030 = vadd.f32 %v2016, %v2029
        %v2031 = vpop.f32.mrf.mxu0
        %v2032 = vadd.f32 %v2018, %v2031
        %2033 = vdwg.mxu0
        %v2034 = vadd.f32 %v1329, %v2030
        %v2035 = vadd.f32 %v1330, %v2032
        %2036 = vst [vmem:[%s599] sm:$0xff] %v2034
        %2037 = vst [vmem:[%s599 + $0x8] sm:$0xff] %v2035
        %s2038 = sand.u32 %s321, 1
        %s2039 = scalar_lea.sflag [#allocation4], %s2038
        %s2040 = sand.u32 %s321, 1
        %s2041 = smul.addr %s2040, 16
        %s2042 = scalar_lea.vmem [#allocation19], %s2041
        // Predicated region
        $region113: #{tpu_custom_call.1} parent=71 // pred_check
          %p2043 = pneg %p331
        $region114: #{tpu_custom_call.1} parent=71 // pred_check_branch
          %2045 = sbr.rel (%p2043) target = $region116
        $region115: #{tpu_custom_call.1} parent=71 // pred_region
          %2047 = vsyncadd %s2039, 0
          %s2048 = smul.addr %s35, 2
          %s2049 = smul.addr %s2048, 8
          %s2050 = scalar_lea.hbm %s13, %s2049
          %s2051 = sshll.u32 %s2042, 4
          %s2052 = int_to_ptr.vmem [resolvable:$true] %s2051
          %s2053 = sshll.u32 %s2050, 4
          %s2054 = int_to_ptr.hbm [resolvable:$true] %s2053
          %2059 = dma.vmem_to_hbm [thread:$0]  %s2052, 256, %s2054, %s2039, 128, 128, 8
        $region116: #{tpu_custom_call.1} parent=71 // pred_fallthru
          _
      $region72: #{tpu_custom_call.1} parent=5 // pred_fallthru
        _
      %p2060 = scmp.le.s32.totalorder 2, %s30
      // Predicated region
      $region117: #{tpu_custom_call.1} parent=5 // pred_check
        %p2061 = pneg %p2060
      $region118: #{tpu_custom_call.1} parent=5 // pred_check_branch
        %2063 = sbr.rel (%p2061) target = $region120
      $region119: #{tpu_custom_call.1} parent=5 // pred_region
        %s2064 = ssub.s32 %s30, 2
        // Predicated region
        $region121: #{tpu_custom_call.1} parent=119 // pred_check
          %p2065 = pneg %p337
        $region122: #{tpu_custom_call.1} parent=119 // pred_check_branch
          %2067 = sbr.rel (%p2065) target = $region124
        $region123: #{tpu_custom_call.1} parent=119 // pred_region
          %s2068 = sand.u32 %s322, 1
          %s2069 = scalar_lea.sflag [#allocation4], %s2068
          %s2070 = sand.u32 %s322, 1
          %s2071 = smul.addr %s2070, 16
          %s2072 = scalar_lea.vmem [#allocation19], %s2071
          %2074 = dma.done %s2069, 256
        $region124: #{tpu_custom_call.1} parent=119 // pred_fallthru
          _
      $region120: #{tpu_custom_call.1} parent=5 // pred_fallthru
        _
    $region6: #{tpu_custom_call.1} parent=1 // loop_footer
      %s34 = sadd.s32 1, %s30
    $region7: #{tpu_custom_call.1} parent=1 // loop_footer_branch
      %29 = sbr.rel target = $region3
    $region8: #{tpu_custom_call.1} parent=1 // loop_exit
      _
    %2075 = vsyncpa [#allocation3], 1
    %s2076 = scalar_lea.sflag [#allocation3], 1
    %2077 = vsyncpa %s2076, 1
    %2078 = vsyncpa [#allocation6], 1
    %2079 = vsyncpa [#allocation9], 1
    %2080 = vsyncpa [#allocation12], 1
    %2081 = vsyncpa [#allocation15], 1
    %2082 = vsyncpa [#allocation18], 1
    %2083 = vsyncpa [#allocation4], 1
    %s2084 = scalar_lea.sflag [#allocation4], 1
    %2085 = vsyncpa %s2084, 1

</llo_original>
